<compile_context>
chip_gen: v7x
topology: tpu7x:2x2x1
jax: 0.10.0
libtpu: 0.0.40
codegen_flags: <defaults>
</compile_context>

<pallas_src>
from functools import partial

import jax
import jax.numpy as jnp
from jax.experimental import pallas as pl
from jax.experimental.pallas import tpu as pltpu


# ----------------------------- config (small, deterministic) -----------------------------
VOCAB_SIZE = 50
WORD_DIM   = 32   # con.word_dim
UNITS      = 32   # con.units  (LSTM hidden size per direction)
NUM_REL    = 8    # con.num_rel
BATCH      = 2
SEQ        = 8


# ----------------------------------- Pallas kernel ---------------------------------------
def _bilstm_linear_kernel(
    x2_ref,       # (T*B, 2D)  [x_time_major | x_time_reversed] along features
    wih2_ref,     # (2D, 8H)   block-diag input weights, gate blocks [i_f i_b f_f f_b g_f g_b o_f o_b]
    bih2_ref,     # (1, 8H)    (b_ih + b_hh) for both directions, same column layout
    whh2_ref,     # (2H, 8H)   block-diag recurrent weights, same column layout
    wlin_ref,     # (2H, R)    linear weights, rows = [fwd hidden | bwd hidden]
    blin_ref,     # (1, R)
    out_ref,      # (T*B, R)   time-major flattened logits
    gates_ref,    # scratch (T*B, 8H)  precomputed input-gate contributions
    hid_ref,      # scratch (T*B, 2H)  [fwd | bwd] per-time hidden outputs
    *, T, B, H,
):
    G = 2 * H   # fused per-gate width (both directions side by side)

    # ---- (1) hoisted input projection + biases: ONE matmul, off the serial path ----
    gates_ref[...] = (
        jnp.dot(x2_ref[...], wih2_ref[...], preferred_element_type=jnp.float32)
        + bih2_ref[...]
    )

    # loop-invariant recurrent weights: load once, keep in vregs
    whh = whh2_ref[...]                              # (2H, 8H)

    # ---- (2) fused fwd+bwd recurrence, unrolled (T static), h/c carried as values ----
    # h/c layout: [:, 0:H] = forward direction, [:, H:2H] = backward direction.
    h = jnp.zeros((B, 2 * H), jnp.float32)
    c = jnp.zeros((B, 2 * H), jnp.float32)
    for s in range(T):
        gx = gates_ref[s * B:(s + 1) * B, :]         # (B, 8H) -- input part, precomputed
        gates = gx + jnp.dot(h, whh, preferred_element_type=jnp.float32)
        # gate blocks (each (B, 2H) = both directions): PyTorch order [i | f | g | o]
        i = jax.nn.sigmoid(gates[:, 0 * G:1 * G])
        f = jax.nn.sigmoid(gates[:, 1 * G:2 * G])
        g = jnp.tanh(gates[:, 2 * G:3 * G])
        o = jax.nn.sigmoid(gates[:, 3 * G:4 * G])
        c = f * c + i * g
        h = o * jnp.tanh(c)
        # forward hidden belongs to time s, backward hidden to time T-1-s
        t_b = T - 1 - s
        hid_ref[s * B:(s + 1) * B, 0:H] = h[:, 0:H]
        hid_ref[t_b * B:(t_b + 1) * B, H:2 * H] = h[:, H:2 * H]

    # ---- (3) final linear: one (T*B, 2H) @ (2H, R) matmul, bias added once ----
    out_ref[...] = (
        jnp.dot(hid_ref[...], wlin_ref[...], preferred_element_type=jnp.float32)
        + blin_ref[...]
    ).astype(out_ref.dtype)


# ------------------------------------ JAX wrapper -----------------------------------------
@jax.jit
def bilstm_crf_forward(token_ids, params):
    """token_ids: (B, T) int32.  Returns logits (B, T, NUM_REL) float32 (tag_ids=None path)."""
    B, T = token_ids.shape
    D, H, R = WORD_DIM, UNITS, NUM_REL

    # Embedding lookup (glue; gather) -> (B, T, D) -> time-major -> sublane-dense (T*B, D).
    embed = jnp.take(params["embedding"], token_ids, axis=0)
    x_tm = jnp.transpose(embed, (1, 0, 2)).astype(jnp.float32)   # (T, B, D)
    x_fwd = x_tm.reshape(T * B, D)
    x_bwd = x_tm[::-1].reshape(T * B, D)                          # time-reversed stream
    x2 = jnp.concatenate([x_fwd, x_bwd], axis=1)                  # (T*B, 2D)

    vspec = pl.BlockSpec(memory_space=pltpu.MemorySpace.VMEM)
    kernel = partial(_bilstm_linear_kernel, T=T, B=B, H=H)

    out_flat = pl.pallas_call(
        kernel,
        out_shape=jax.ShapeDtypeStruct((T * B, R), jnp.float32),
        in_specs=[vspec] * 6,
        out_specs=vspec,
        scratch_shapes=[
            pltpu.VMEM((T * B, 8 * H), jnp.float32),   # precomputed input gates
            pltpu.VMEM((T * B, 2 * H), jnp.float32),   # [fwd | bwd] hidden outputs
        ],
    )(x2, params["wih2"], params["bih2"], params["whh2"], params["wlin"], params["blin"])

    # back to batch-first (B, T, R)
    return jnp.transpose(out_flat.reshape(T, B, R), (1, 0, 2))


# --------------------------------- parameter construction ---------------------------------
def _interleave_gate_cols(wf, wb, H):
    """wf, wb: (rows, 4H) with PyTorch gate order [i|f|g|o] along columns.
    Returns (rows, 8H) with column blocks [i_f i_b f_f f_b g_f g_b o_f o_b]."""
    cols = []
    for k in range(4):
        cols.append(wf[:, k * H:(k + 1) * H])
        cols.append(wb[:, k * H:(k + 1) * H])
    return jnp.concatenate(cols, axis=1)


def init_params(key):
    H, D, R, V = UNITS, WORD_DIM, NUM_REL, VOCAB_SIZE
    ks = jax.random.split(key, 16)
    k_lstm = 1.0 / jnp.sqrt(jnp.float32(H))
    k_lin = 1.0 / jnp.sqrt(jnp.float32(2 * H))

    def unif(k, shape, bound):
        return jax.random.uniform(k, shape, jnp.float32, -bound, bound)

    # nn.Embedding default init: N(0, 1)
    embedding = jax.random.normal(ks[0], (V, D), jnp.float32)

    # PyTorch LSTM params: weight_ih (4H, D), weight_hh (4H, H), biases (4H,)
    w_ih_f = unif(ks[1], (4 * H, D), k_lstm)
    w_hh_f = unif(ks[2], (4 * H, H), k_lstm)
    b_ih_f = unif(ks[3], (4 * H,), k_lstm)
    b_hh_f = unif(ks[4], (4 * H,), k_lstm)
    w_ih_b = unif(ks[5], (4 * H, D), k_lstm)
    w_hh_b = unif(ks[6], (4 * H, H), k_lstm)
    b_ih_b = unif(ks[7], (4 * H,), k_lstm)
    b_hh_b = unif(ks[8], (4 * H,), k_lstm)

    # nn.Linear(2H, R): weight (R, 2H), bias (R,)
    w_lin = unif(ks[9], (R, 2 * H), k_lin)
    b_lin = unif(ks[10], (R,), k_lin)

    # ---- pack into the fused kernel layout (pure-JAX layout plumbing) ----
    Zd = jnp.zeros((D, 4 * H), jnp.float32)
    Zh = jnp.zeros((H, 4 * H), jnp.float32)

    # input projection: rows 0:D multiply the forward stream, rows D:2D the reversed stream
    wih2 = jnp.concatenate([
        _interleave_gate_cols(w_ih_f.T, Zd, H),
        _interleave_gate_cols(Zd, w_ih_b.T, H),
    ], axis=0)                                                     # (2D, 8H)

    # recurrent projection: rows 0:H multiply h_fwd, rows H:2H multiply h_bwd (block-diagonal)
    whh2 = jnp.concatenate([
        _interleave_gate_cols(w_hh_f.T, Zh, H),
        _interleave_gate_cols(Zh, w_hh_b.T, H),
    ], axis=0)                                                     # (2H, 8H)

    # combined biases (b_ih + b_hh) for both directions, same column layout
    bih2 = _interleave_gate_cols((b_ih_f + b_hh_f)[None, :],
                                 (b_ih_b + b_hh_b)[None, :], H)    # (1, 8H)

    return {
        "embedding": embedding,
        "wih2": wih2,
        "bih2": bih2,
        "whh2": whh2,
        "wlin": w_lin.T,            # (2H, R), rows = [fwd hidden | bwd hidden]
        "blin": b_lin[None, :],     # (1, R)
    }


# ------------------------------------------ main ------------------------------------------
if __name__ == "__main__":
    key = jax.random.PRNGKey(0)
    k_tok, k_par = jax.random.split(key)

    token_ids = jax.random.randint(k_tok, (BATCH, SEQ), 0, VOCAB_SIZE, dtype=jnp.int32)
    params = init_params(k_par)

    logits = bilstm_crf_forward(token_ids, params)
    jax.block_until_ready(logits)

    assert logits.shape == (BATCH, SEQ, NUM_REL)
    assert logits.dtype == jnp.float32
    assert bool(jnp.all(jnp.isfinite(logits)))
    print("KERNEL_OK")
</pallas_src>

<mosaic_0001>
module attributes {stable_mosaic.version = 11 : i64} {
  func.func @_bilstm_linear_kernel(%arg0: memref<16x64xf32, #tpu.memory_space<vmem>>, %arg1: memref<64x256xf32, #tpu.memory_space<vmem>>, %arg2: memref<1x256xf32, #tpu.memory_space<vmem>>, %arg3: memref<64x256xf32, #tpu.memory_space<vmem>>, %arg4: memref<64x8xf32, #tpu.memory_space<vmem>>, %arg5: memref<1x8xf32, #tpu.memory_space<vmem>>, %arg6: memref<16x8xf32, #tpu.memory_space<vmem>>, %arg7: memref<16x256xf32, #tpu.memory_space<vmem>>, %arg8: memref<16x64xf32, #tpu.memory_space<vmem>>) attributes {dimension_semantics = [], scalar_prefetch = 0 : i64, scratch_operands = 2 : i64, tpu.core_type = #tpu.core_type<tc>} {
    %c0 = arith.constant 0 : index
    %c0_0 = arith.constant 0 : index
    %0 = vector.load %arg0[%c0, %c0_0] : memref<16x64xf32, #tpu.memory_space<vmem>>, vector<16x64xf32>
    %c0_1 = arith.constant 0 : index
    %c0_2 = arith.constant 0 : index
    %1 = vector.load %arg1[%c0_1, %c0_2] : memref<64x256xf32, #tpu.memory_space<vmem>>, vector<64x256xf32>
    %cst = arith.constant dense<0.000000e+00> : vector<16x256xf32>
    %2 = tpu.matmul %0, %1, %cst {dimension_numbers = #tpu.dot_dimension_numbers<[1], [0], [0], [1], [0, 0, 1, 1], [], []>} : vector<16x64xf32>, vector<64x256xf32>, vector<16x256xf32> -> vector<16x256xf32>
    %c0_3 = arith.constant 0 : index
    %c0_4 = arith.constant 0 : index
    %3 = vector.load %arg2[%c0_3, %c0_4] : memref<1x256xf32, #tpu.memory_space<vmem>>, vector<1x256xf32>
    %4 = vector.broadcast %3 : vector<1x256xf32> to vector<16x256xf32>
    %5 = arith.addf %2, %4 : vector<16x256xf32>
    %c0_5 = arith.constant 0 : index
    %c0_6 = arith.constant 0 : index
    %6 = vector.load %arg7[%c0_5, %c0_6] : memref<16x256xf32, #tpu.memory_space<vmem>>, vector<16x256xf32>
    tpu.vector_store %arg7[%c0_5, %c0_6], %5 {strides = array<i32>} : memref<16x256xf32, #tpu.memory_space<vmem>>, vector<16x256xf32>,
    %c0_7 = arith.constant 0 : index
    %c0_8 = arith.constant 0 : index
    %7 = vector.load %arg3[%c0_7, %c0_8] : memref<64x256xf32, #tpu.memory_space<vmem>>, vector<64x256xf32>
    %cst_9 = arith.constant 0.000000e+00 : f32
    %8 = vector.broadcast %cst_9 : f32 to vector<2x64xf32>
    %cst_10 = arith.constant 0.000000e+00 : f32
    %9 = vector.broadcast %cst_10 : f32 to vector<2x64xf32>
    %c0_11 = arith.constant 0 : index
    %c0_12 = arith.constant 0 : index
    %10 = vector.load %arg7[%c0_11, %c0_12] : memref<16x256xf32, #tpu.memory_space<vmem>>, vector<2x256xf32>
    %cst_13 = arith.constant dense<0.000000e+00> : vector<2x256xf32>
    %11 = tpu.matmul %8, %7, %cst_13 {dimension_numbers = #tpu.dot_dimension_numbers<[1], [0], [0], [1], [0, 0, 1, 1], [], []>} : vector<2x64xf32>, vector<64x256xf32>, vector<2x256xf32> -> vector<2x256xf32>
    %12 = arith.addf %10, %11 : vector<2x256xf32>
    %13 = vector.extract_strided_slice %12 {offsets = [0, 0], sizes = [2, 64], strides = [1, 1]} : vector<2x256xf32> to vector<2x64xf32>
    %14 = arith.negf %13 : vector<2x64xf32>
    %15 = math.exp %14 : vector<2x64xf32>
    %cst_14 = arith.constant 1.000000e+00 : f32
    %16 = vector.broadcast %cst_14 : f32 to vector<2x64xf32>
    %17 = arith.addf %16, %15 : vector<2x64xf32>
    %18 = arith.divf %16, %17 : vector<2x64xf32>
    %19 = vector.extract_strided_slice %12 {offsets = [0, 64], sizes = [2, 64], strides = [1, 1]} : vector<2x256xf32> to vector<2x64xf32>
    %20 = arith.negf %19 : vector<2x64xf32>
    %21 = math.exp %20 : vector<2x64xf32>
    %cst_15 = arith.constant 1.000000e+00 : f32
    %22 = vector.broadcast %cst_15 : f32 to vector<2x64xf32>
    %23 = arith.addf %22, %21 : vector<2x64xf32>
    %24 = arith.divf %22, %23 : vector<2x64xf32>
    %25 = vector.extract_strided_slice %12 {offsets = [0, 128], sizes = [2, 64], strides = [1, 1]} : vector<2x256xf32> to vector<2x64xf32>
    %26 = math.tanh %25 : vector<2x64xf32>
    %27 = vector.extract_strided_slice %12 {offsets = [0, 192], sizes = [2, 64], strides = [1, 1]} : vector<2x256xf32> to vector<2x64xf32>
    %28 = arith.negf %27 : vector<2x64xf32>
    %29 = math.exp %28 : vector<2x64xf32>
    %cst_16 = arith.constant 1.000000e+00 : f32
    %30 = vector.broadcast %cst_16 : f32 to vector<2x64xf32>
    %31 = arith.addf %30, %29 : vector<2x64xf32>
    %32 = arith.divf %30, %31 : vector<2x64xf32>
    %33 = arith.mulf %24, %9 : vector<2x64xf32>
    %34 = arith.mulf %18, %26 : vector<2x64xf32>
    %35 = arith.addf %33, %34 : vector<2x64xf32>
    %36 = math.tanh %35 : vector<2x64xf32>
    %37 = arith.mulf %32, %36 : vector<2x64xf32>
    %38 = vector.extract_strided_slice %37 {offsets = [0, 0], sizes = [2, 32], strides = [1, 1]} : vector<2x64xf32> to vector<2x32xf32>
    %c0_17 = arith.constant 0 : index
    %c0_18 = arith.constant 0 : index
    %39 = vector.load %arg8[%c0_17, %c0_18] : memref<16x64xf32, #tpu.memory_space<vmem>>, vector<2x32xf32>
    tpu.vector_store %arg8[%c0_17, %c0_18], %38 {strides = array<i32>} : memref<16x64xf32, #tpu.memory_space<vmem>>, vector<2x32xf32>,
    %40 = vector.extract_strided_slice %37 {offsets = [0, 32], sizes = [2, 32], strides = [1, 1]} : vector<2x64xf32> to vector<2x32xf32>
    %c14 = arith.constant 14 : index
    %c32 = arith.constant 32 : index
    %41 = vector.load %arg8[%c14, %c32] : memref<16x64xf32, #tpu.memory_space<vmem>>, vector<2x32xf32>
    tpu.vector_store %arg8[%c14, %c32], %40 {strides = array<i32>} : memref<16x64xf32, #tpu.memory_space<vmem>>, vector<2x32xf32>,
    %c2 = arith.constant 2 : index
    %c0_19 = arith.constant 0 : index
    %42 = vector.load %arg7[%c2, %c0_19] : memref<16x256xf32, #tpu.memory_space<vmem>>, vector<2x256xf32>
    %cst_20 = arith.constant dense<0.000000e+00> : vector<2x256xf32>
    %43 = tpu.matmul %37, %7, %cst_20 {dimension_numbers = #tpu.dot_dimension_numbers<[1], [0], [0], [1], [0, 0, 1, 1], [], []>} : vector<2x64xf32>, vector<64x256xf32>, vector<2x256xf32> -> vector<2x256xf32>
    %44 = arith.addf %42, %43 : vector<2x256xf32>
    %45 = vector.extract_strided_slice %44 {offsets = [0, 0], sizes = [2, 64], strides = [1, 1]} : vector<2x256xf32> to vector<2x64xf32>
    %46 = arith.negf %45 : vector<2x64xf32>
    %47 = math.exp %46 : vector<2x64xf32>
    %cst_21 = arith.constant 1.000000e+00 : f32
    %48 = vector.broadcast %cst_21 : f32 to vector<2x64xf32>
    %49 = arith.addf %48, %47 : vector<2x64xf32>
    %50 = arith.divf %48, %49 : vector<2x64xf32>
    %51 = vector.extract_strided_slice %44 {offsets = [0, 64], sizes = [2, 64], strides = [1, 1]} : vector<2x256xf32> to vector<2x64xf32>
    %52 = arith.negf %51 : vector<2x64xf32>
    %53 = math.exp %52 : vector<2x64xf32>
    %cst_22 = arith.constant 1.000000e+00 : f32
    %54 = vector.broadcast %cst_22 : f32 to vector<2x64xf32>
    %55 = arith.addf %54, %53 : vector<2x64xf32>
    %56 = arith.divf %54, %55 : vector<2x64xf32>
    %57 = vector.extract_strided_slice %44 {offsets = [0, 128], sizes = [2, 64], strides = [1, 1]} : vector<2x256xf32> to vector<2x64xf32>
    %58 = math.tanh %57 : vector<2x64xf32>
    %59 = vector.extract_strided_slice %44 {offsets = [0, 192], sizes = [2, 64], strides = [1, 1]} : vector<2x256xf32> to vector<2x64xf32>
    %60 = arith.negf %59 : vector<2x64xf32>
    %61 = math.exp %60 : vector<2x64xf32>
    %cst_23 = arith.constant 1.000000e+00 : f32
    %62 = vector.broadcast %cst_23 : f32 to vector<2x64xf32>
    %63 = arith.addf %62, %61 : vector<2x64xf32>
    %64 = arith.divf %62, %63 : vector<2x64xf32>
    %65 = arith.mulf %56, %35 : vector<2x64xf32>
    %66 = arith.mulf %50, %58 : vector<2x64xf32>
    %67 = arith.addf %65, %66 : vector<2x64xf32>
    %68 = math.tanh %67 : vector<2x64xf32>
    %69 = arith.mulf %64, %68 : vector<2x64xf32>
    %70 = vector.extract_strided_slice %69 {offsets = [0, 0], sizes = [2, 32], strides = [1, 1]} : vector<2x64xf32> to vector<2x32xf32>
    %c2_24 = arith.constant 2 : index
    %c0_25 = arith.constant 0 : index
    %71 = vector.load %arg8[%c2_24, %c0_25] : memref<16x64xf32, #tpu.memory_space<vmem>>, vector<2x32xf32>
    tpu.vector_store %arg8[%c2_24, %c0_25], %70 {strides = array<i32>} : memref<16x64xf32, #tpu.memory_space<vmem>>, vector<2x32xf32>,
    %72 = vector.extract_strided_slice %69 {offsets = [0, 32], sizes = [2, 32], strides = [1, 1]} : vector<2x64xf32> to vector<2x32xf32>
    %c12 = arith.constant 12 : index
    %c32_26 = arith.constant 32 : index
    %73 = vector.load %arg8[%c12, %c32_26] : memref<16x64xf32, #tpu.memory_space<vmem>>, vector<2x32xf32>
    tpu.vector_store %arg8[%c12, %c32_26], %72 {strides = array<i32>} : memref<16x64xf32, #tpu.memory_space<vmem>>, vector<2x32xf32>,
    %c4 = arith.constant 4 : index
    %c0_27 = arith.constant 0 : index
    %74 = vector.load %arg7[%c4, %c0_27] : memref<16x256xf32, #tpu.memory_space<vmem>>, vector<2x256xf32>
    %cst_28 = arith.constant dense<0.000000e+00> : vector<2x256xf32>
    %75 = tpu.matmul %69, %7, %cst_28 {dimension_numbers = #tpu.dot_dimension_numbers<[1], [0], [0], [1], [0, 0, 1, 1], [], []>} : vector<2x64xf32>, vector<64x256xf32>, vector<2x256xf32> -> vector<2x256xf32>
    %76 = arith.addf %74, %75 : vector<2x256xf32>
    %77 = vector.extract_strided_slice %76 {offsets = [0, 0], sizes = [2, 64], strides = [1, 1]} : vector<2x256xf32> to vector<2x64xf32>
    %78 = arith.negf %77 : vector<2x64xf32>
    %79 = math.exp %78 : vector<2x64xf32>
    %cst_29 = arith.constant 1.000000e+00 : f32
    %80 = vector.broadcast %cst_29 : f32 to vector<2x64xf32>
    %81 = arith.addf %80, %79 : vector<2x64xf32>
    %82 = arith.divf %80, %81 : vector<2x64xf32>
    %83 = vector.extract_strided_slice %76 {offsets = [0, 64], sizes = [2, 64], strides = [1, 1]} : vector<2x256xf32> to vector<2x64xf32>
    %84 = arith.negf %83 : vector<2x64xf32>
    %85 = math.exp %84 : vector<2x64xf32>
    %cst_30 = arith.constant 1.000000e+00 : f32
    %86 = vector.broadcast %cst_30 : f32 to vector<2x64xf32>
    %87 = arith.addf %86, %85 : vector<2x64xf32>
    %88 = arith.divf %86, %87 : vector<2x64xf32>
    %89 = vector.extract_strided_slice %76 {offsets = [0, 128], sizes = [2, 64], strides = [1, 1]} : vector<2x256xf32> to vector<2x64xf32>
    %90 = math.tanh %89 : vector<2x64xf32>
    %91 = vector.extract_strided_slice %76 {offsets = [0, 192], sizes = [2, 64], strides = [1, 1]} : vector<2x256xf32> to vector<2x64xf32>
    %92 = arith.negf %91 : vector<2x64xf32>
    %93 = math.exp %92 : vector<2x64xf32>
    %cst_31 = arith.constant 1.000000e+00 : f32
    %94 = vector.broadcast %cst_31 : f32 to vector<2x64xf32>
    %95 = arith.addf %94, %93 : vector<2x64xf32>
    %96 = arith.divf %94, %95 : vector<2x64xf32>
    %97 = arith.mulf %88, %67 : vector<2x64xf32>
    %98 = arith.mulf %82, %90 : vector<2x64xf32>
    %99 = arith.addf %97, %98 : vector<2x64xf32>
    %100 = math.tanh %99 : vector<2x64xf32>
    %101 = arith.mulf %96, %100 : vector<2x64xf32>
    %102 = vector.extract_strided_slice %101 {offsets = [0, 0], sizes = [2, 32], strides = [1, 1]} : vector<2x64xf32> to vector<2x32xf32>
    %c4_32 = arith.constant 4 : index
    %c0_33 = arith.constant 0 : index
    %103 = vector.load %arg8[%c4_32, %c0_33] : memref<16x64xf32, #tpu.memory_space<vmem>>, vector<2x32xf32>
    tpu.vector_store %arg8[%c4_32, %c0_33], %102 {strides = array<i32>} : memref<16x64xf32, #tpu.memory_space<vmem>>, vector<2x32xf32>,
    %104 = vector.extract_strided_slice %101 {offsets = [0, 32], sizes = [2, 32], strides = [1, 1]} : vector<2x64xf32> to vector<2x32xf32>
    %c10 = arith.constant 10 : index
    %c32_34 = arith.constant 32 : index
    %105 = vector.load %arg8[%c10, %c32_34] : memref<16x64xf32, #tpu.memory_space<vmem>>, vector<2x32xf32>
    tpu.vector_store %arg8[%c10, %c32_34], %104 {strides = array<i32>} : memref<16x64xf32, #tpu.memory_space<vmem>>, vector<2x32xf32>,
    %c6 = arith.constant 6 : index
    %c0_35 = arith.constant 0 : index
    %106 = vector.load %arg7[%c6, %c0_35] : memref<16x256xf32, #tpu.memory_space<vmem>>, vector<2x256xf32>
    %cst_36 = arith.constant dense<0.000000e+00> : vector<2x256xf32>
    %107 = tpu.matmul %101, %7, %cst_36 {dimension_numbers = #tpu.dot_dimension_numbers<[1], [0], [0], [1], [0, 0, 1, 1], [], []>} : vector<2x64xf32>, vector<64x256xf32>, vector<2x256xf32> -> vector<2x256xf32>
    %108 = arith.addf %106, %107 : vector<2x256xf32>
    %109 = vector.extract_strided_slice %108 {offsets = [0, 0], sizes = [2, 64], strides = [1, 1]} : vector<2x256xf32> to vector<2x64xf32>
    %110 = arith.negf %109 : vector<2x64xf32>
    %111 = math.exp %110 : vector<2x64xf32>
    %cst_37 = arith.constant 1.000000e+00 : f32
    %112 = vector.broadcast %cst_37 : f32 to vector<2x64xf32>
    %113 = arith.addf %112, %111 : vector<2x64xf32>
    %114 = arith.divf %112, %113 : vector<2x64xf32>
    %115 = vector.extract_strided_slice %108 {offsets = [0, 64], sizes = [2, 64], strides = [1, 1]} : vector<2x256xf32> to vector<2x64xf32>
    %116 = arith.negf %115 : vector<2x64xf32>
    %117 = math.exp %116 : vector<2x64xf32>
    %cst_38 = arith.constant 1.000000e+00 : f32
    %118 = vector.broadcast %cst_38 : f32 to vector<2x64xf32>
    %119 = arith.addf %118, %117 : vector<2x64xf32>
    %120 = arith.divf %118, %119 : vector<2x64xf32>
    %121 = vector.extract_strided_slice %108 {offsets = [0, 128], sizes = [2, 64], strides = [1, 1]} : vector<2x256xf32> to vector<2x64xf32>
    %122 = math.tanh %121 : vector<2x64xf32>
    %123 = vector.extract_strided_slice %108 {offsets = [0, 192], sizes = [2, 64], strides = [1, 1]} : vector<2x256xf32> to vector<2x64xf32>
    %124 = arith.negf %123 : vector<2x64xf32>
    %125 = math.exp %124 : vector<2x64xf32>
    %cst_39 = arith.constant 1.000000e+00 : f32
    %126 = vector.broadcast %cst_39 : f32 to vector<2x64xf32>
    %127 = arith.addf %126, %125 : vector<2x64xf32>
    %128 = arith.divf %126, %127 : vector<2x64xf32>
    %129 = arith.mulf %120, %99 : vector<2x64xf32>
    %130 = arith.mulf %114, %122 : vector<2x64xf32>
    %131 = arith.addf %129, %130 : vector<2x64xf32>
    %132 = math.tanh %131 : vector<2x64xf32>
    %133 = arith.mulf %128, %132 : vector<2x64xf32>
    %134 = vector.extract_strided_slice %133 {offsets = [0, 0], sizes = [2, 32], strides = [1, 1]} : vector<2x64xf32> to vector<2x32xf32>
    %c6_40 = arith.constant 6 : index
    %c0_41 = arith.constant 0 : index
    %135 = vector.load %arg8[%c6_40, %c0_41] : memref<16x64xf32, #tpu.memory_space<vmem>>, vector<2x32xf32>
    tpu.vector_store %arg8[%c6_40, %c0_41], %134 {strides = array<i32>} : memref<16x64xf32, #tpu.memory_space<vmem>>, vector<2x32xf32>,
    %136 = vector.extract_strided_slice %133 {offsets = [0, 32], sizes = [2, 32], strides = [1, 1]} : vector<2x64xf32> to vector<2x32xf32>
    %c8 = arith.constant 8 : index
    %c32_42 = arith.constant 32 : index
    %137 = vector.load %arg8[%c8, %c32_42] : memref<16x64xf32, #tpu.memory_space<vmem>>, vector<2x32xf32>
    tpu.vector_store %arg8[%c8, %c32_42], %136 {strides = array<i32>} : memref<16x64xf32, #tpu.memory_space<vmem>>, vector<2x32xf32>,
    %c8_43 = arith.constant 8 : index
    %c0_44 = arith.constant 0 : index
    %138 = vector.load %arg7[%c8_43, %c0_44] : memref<16x256xf32, #tpu.memory_space<vmem>>, vector<2x256xf32>
    %cst_45 = arith.constant dense<0.000000e+00> : vector<2x256xf32>
    %139 = tpu.matmul %133, %7, %cst_45 {dimension_numbers = #tpu.dot_dimension_numbers<[1], [0], [0], [1], [0, 0, 1, 1], [], []>} : vector<2x64xf32>, vector<64x256xf32>, vector<2x256xf32> -> vector<2x256xf32>
    %140 = arith.addf %138, %139 : vector<2x256xf32>
    %141 = vector.extract_strided_slice %140 {offsets = [0, 0], sizes = [2, 64], strides = [1, 1]} : vector<2x256xf32> to vector<2x64xf32>
    %142 = arith.negf %141 : vector<2x64xf32>
    %143 = math.exp %142 : vector<2x64xf32>
    %cst_46 = arith.constant 1.000000e+00 : f32
    %144 = vector.broadcast %cst_46 : f32 to vector<2x64xf32>
    %145 = arith.addf %144, %143 : vector<2x64xf32>
    %146 = arith.divf %144, %145 : vector<2x64xf32>
    %147 = vector.extract_strided_slice %140 {offsets = [0, 64], sizes = [2, 64], strides = [1, 1]} : vector<2x256xf32> to vector<2x64xf32>
    %148 = arith.negf %147 : vector<2x64xf32>
    %149 = math.exp %148 : vector<2x64xf32>
    %cst_47 = arith.constant 1.000000e+00 : f32
    %150 = vector.broadcast %cst_47 : f32 to vector<2x64xf32>
    %151 = arith.addf %150, %149 : vector<2x64xf32>
    %152 = arith.divf %150, %151 : vector<2x64xf32>
    %153 = vector.extract_strided_slice %140 {offsets = [0, 128], sizes = [2, 64], strides = [1, 1]} : vector<2x256xf32> to vector<2x64xf32>
    %154 = math.tanh %153 : vector<2x64xf32>
    %155 = vector.extract_strided_slice %140 {offsets = [0, 192], sizes = [2, 64], strides = [1, 1]} : vector<2x256xf32> to vector<2x64xf32>
    %156 = arith.negf %155 : vector<2x64xf32>
    %157 = math.exp %156 : vector<2x64xf32>
    %cst_48 = arith.constant 1.000000e+00 : f32
    %158 = vector.broadcast %cst_48 : f32 to vector<2x64xf32>
    %159 = arith.addf %158, %157 : vector<2x64xf32>
    %160 = arith.divf %158, %159 : vector<2x64xf32>
    %161 = arith.mulf %152, %131 : vector<2x64xf32>
    %162 = arith.mulf %146, %154 : vector<2x64xf32>
    %163 = arith.addf %161, %162 : vector<2x64xf32>
    %164 = math.tanh %163 : vector<2x64xf32>
    %165 = arith.mulf %160, %164 : vector<2x64xf32>
    %166 = vector.extract_strided_slice %165 {offsets = [0, 0], sizes = [2, 32], strides = [1, 1]} : vector<2x64xf32> to vector<2x32xf32>
    %c8_49 = arith.constant 8 : index
    %c0_50 = arith.constant 0 : index
    %167 = vector.load %arg8[%c8_49, %c0_50] : memref<16x64xf32, #tpu.memory_space<vmem>>, vector<2x32xf32>
    tpu.vector_store %arg8[%c8_49, %c0_50], %166 {strides = array<i32>} : memref<16x64xf32, #tpu.memory_space<vmem>>, vector<2x32xf32>,
    %168 = vector.extract_strided_slice %165 {offsets = [0, 32], sizes = [2, 32], strides = [1, 1]} : vector<2x64xf32> to vector<2x32xf32>
    %c6_51 = arith.constant 6 : index
    %c32_52 = arith.constant 32 : index
    %169 = vector.load %arg8[%c6_51, %c32_52] : memref<16x64xf32, #tpu.memory_space<vmem>>, vector<2x32xf32>
    tpu.vector_store %arg8[%c6_51, %c32_52], %168 {strides = array<i32>} : memref<16x64xf32, #tpu.memory_space<vmem>>, vector<2x32xf32>,
    %c10_53 = arith.constant 10 : index
    %c0_54 = arith.constant 0 : index
    %170 = vector.load %arg7[%c10_53, %c0_54] : memref<16x256xf32, #tpu.memory_space<vmem>>, vector<2x256xf32>
    %cst_55 = arith.constant dense<0.000000e+00> : vector<2x256xf32>
    %171 = tpu.matmul %165, %7, %cst_55 {dimension_numbers = #tpu.dot_dimension_numbers<[1], [0], [0], [1], [0, 0, 1, 1], [], []>} : vector<2x64xf32>, vector<64x256xf32>, vector<2x256xf32> -> vector<2x256xf32>
    %172 = arith.addf %170, %171 : vector<2x256xf32>
    %173 = vector.extract_strided_slice %172 {offsets = [0, 0], sizes = [2, 64], strides = [1, 1]} : vector<2x256xf32> to vector<2x64xf32>
    %174 = arith.negf %173 : vector<2x64xf32>
    %175 = math.exp %174 : vector<2x64xf32>
    %cst_56 = arith.constant 1.000000e+00 : f32
    %176 = vector.broadcast %cst_56 : f32 to vector<2x64xf32>
    %177 = arith.addf %176, %175 : vector<2x64xf32>
    %178 = arith.divf %176, %177 : vector<2x64xf32>
    %179 = vector.extract_strided_slice %172 {offsets = [0, 64], sizes = [2, 64], strides = [1, 1]} : vector<2x256xf32> to vector<2x64xf32>
    %180 = arith.negf %179 : vector<2x64xf32>
    %181 = math.exp %180 : vector<2x64xf32>
    %cst_57 = arith.constant 1.000000e+00 : f32
    %182 = vector.broadcast %cst_57 : f32 to vector<2x64xf32>
    %183 = arith.addf %182, %181 : vector<2x64xf32>
    %184 = arith.divf %182, %183 : vector<2x64xf32>
    %185 = vector.extract_strided_slice %172 {offsets = [0, 128], sizes = [2, 64], strides = [1, 1]} : vector<2x256xf32> to vector<2x64xf32>
    %186 = math.tanh %185 : vector<2x64xf32>
    %187 = vector.extract_strided_slice %172 {offsets = [0, 192], sizes = [2, 64], strides = [1, 1]} : vector<2x256xf32> to vector<2x64xf32>
    %188 = arith.negf %187 : vector<2x64xf32>
    %189 = math.exp %188 : vector<2x64xf32>
    %cst_58 = arith.constant 1.000000e+00 : f32
    %190 = vector.broadcast %cst_58 : f32 to vector<2x64xf32>
    %191 = arith.addf %190, %189 : vector<2x64xf32>
    %192 = arith.divf %190, %191 : vector<2x64xf32>
    %193 = arith.mulf %184, %163 : vector<2x64xf32>
    %194 = arith.mulf %178, %186 : vector<2x64xf32>
    %195 = arith.addf %193, %194 : vector<2x64xf32>
    %196 = math.tanh %195 : vector<2x64xf32>
    %197 = arith.mulf %192, %196 : vector<2x64xf32>
    %198 = vector.extract_strided_slice %197 {offsets = [0, 0], sizes = [2, 32], strides = [1, 1]} : vector<2x64xf32> to vector<2x32xf32>
    %c10_59 = arith.constant 10 : index
    %c0_60 = arith.constant 0 : index
    %199 = vector.load %arg8[%c10_59, %c0_60] : memref<16x64xf32, #tpu.memory_space<vmem>>, vector<2x32xf32>
    tpu.vector_store %arg8[%c10_59, %c0_60], %198 {strides = array<i32>} : memref<16x64xf32, #tpu.memory_space<vmem>>, vector<2x32xf32>,
    %200 = vector.extract_strided_slice %197 {offsets = [0, 32], sizes = [2, 32], strides = [1, 1]} : vector<2x64xf32> to vector<2x32xf32>
    %c4_61 = arith.constant 4 : index
    %c32_62 = arith.constant 32 : index
    %201 = vector.load %arg8[%c4_61, %c32_62] : memref<16x64xf32, #tpu.memory_space<vmem>>, vector<2x32xf32>
    tpu.vector_store %arg8[%c4_61, %c32_62], %200 {strides = array<i32>} : memref<16x64xf32, #tpu.memory_space<vmem>>, vector<2x32xf32>,
    %c12_63 = arith.constant 12 : index
    %c0_64 = arith.constant 0 : index
    %202 = vector.load %arg7[%c12_63, %c0_64] : memref<16x256xf32, #tpu.memory_space<vmem>>, vector<2x256xf32>
    %cst_65 = arith.constant dense<0.000000e+00> : vector<2x256xf32>
    %203 = tpu.matmul %197, %7, %cst_65 {dimension_numbers = #tpu.dot_dimension_numbers<[1], [0], [0], [1], [0, 0, 1, 1], [], []>} : vector<2x64xf32>, vector<64x256xf32>, vector<2x256xf32> -> vector<2x256xf32>
    %204 = arith.addf %202, %203 : vector<2x256xf32>
    %205 = vector.extract_strided_slice %204 {offsets = [0, 0], sizes = [2, 64], strides = [1, 1]} : vector<2x256xf32> to vector<2x64xf32>
    %206 = arith.negf %205 : vector<2x64xf32>
    %207 = math.exp %206 : vector<2x64xf32>
    %cst_66 = arith.constant 1.000000e+00 : f32
    %208 = vector.broadcast %cst_66 : f32 to vector<2x64xf32>
    %209 = arith.addf %208, %207 : vector<2x64xf32>
    %210 = arith.divf %208, %209 : vector<2x64xf32>
    %211 = vector.extract_strided_slice %204 {offsets = [0, 64], sizes = [2, 64], strides = [1, 1]} : vector<2x256xf32> to vector<2x64xf32>
    %212 = arith.negf %211 : vector<2x64xf32>
    %213 = math.exp %212 : vector<2x64xf32>
    %cst_67 = arith.constant 1.000000e+00 : f32
    %214 = vector.broadcast %cst_67 : f32 to vector<2x64xf32>
    %215 = arith.addf %214, %213 : vector<2x64xf32>
    %216 = arith.divf %214, %215 : vector<2x64xf32>
    %217 = vector.extract_strided_slice %204 {offsets = [0, 128], sizes = [2, 64], strides = [1, 1]} : vector<2x256xf32> to vector<2x64xf32>
    %218 = math.tanh %217 : vector<2x64xf32>
    %219 = vector.extract_strided_slice %204 {offsets = [0, 192], sizes = [2, 64], strides = [1, 1]} : vector<2x256xf32> to vector<2x64xf32>
    %220 = arith.negf %219 : vector<2x64xf32>
    %221 = math.exp %220 : vector<2x64xf32>
    %cst_68 = arith.constant 1.000000e+00 : f32
    %222 = vector.broadcast %cst_68 : f32 to vector<2x64xf32>
    %223 = arith.addf %222, %221 : vector<2x64xf32>
    %224 = arith.divf %222, %223 : vector<2x64xf32>
    %225 = arith.mulf %216, %195 : vector<2x64xf32>
    %226 = arith.mulf %210, %218 : vector<2x64xf32>
    %227 = arith.addf %225, %226 : vector<2x64xf32>
    %228 = math.tanh %227 : vector<2x64xf32>
    %229 = arith.mulf %224, %228 : vector<2x64xf32>
    %230 = vector.extract_strided_slice %229 {offsets = [0, 0], sizes = [2, 32], strides = [1, 1]} : vector<2x64xf32> to vector<2x32xf32>
    %c12_69 = arith.constant 12 : index
    %c0_70 = arith.constant 0 : index
    %231 = vector.load %arg8[%c12_69, %c0_70] : memref<16x64xf32, #tpu.memory_space<vmem>>, vector<2x32xf32>
    tpu.vector_store %arg8[%c12_69, %c0_70], %230 {strides = array<i32>} : memref<16x64xf32, #tpu.memory_space<vmem>>, vector<2x32xf32>,
    %232 = vector.extract_strided_slice %229 {offsets = [0, 32], sizes = [2, 32], strides = [1, 1]} : vector<2x64xf32> to vector<2x32xf32>
    %c2_71 = arith.constant 2 : index
    %c32_72 = arith.constant 32 : index
    %233 = vector.load %arg8[%c2_71, %c32_72] : memref<16x64xf32, #tpu.memory_space<vmem>>, vector<2x32xf32>
    tpu.vector_store %arg8[%c2_71, %c32_72], %232 {strides = array<i32>} : memref<16x64xf32, #tpu.memory_space<vmem>>, vector<2x32xf32>,
    %c14_73 = arith.constant 14 : index
    %c0_74 = arith.constant 0 : index
    %234 = vector.load %arg7[%c14_73, %c0_74] : memref<16x256xf32, #tpu.memory_space<vmem>>, vector<2x256xf32>
    %cst_75 = arith.constant dense<0.000000e+00> : vector<2x256xf32>
    %235 = tpu.matmul %229, %7, %cst_75 {dimension_numbers = #tpu.dot_dimension_numbers<[1], [0], [0], [1], [0, 0, 1, 1], [], []>} : vector<2x64xf32>, vector<64x256xf32>, vector<2x256xf32> -> vector<2x256xf32>
    %236 = arith.addf %234, %235 : vector<2x256xf32>
    %237 = vector.extract_strided_slice %236 {offsets = [0, 0], sizes = [2, 64], strides = [1, 1]} : vector<2x256xf32> to vector<2x64xf32>
    %238 = arith.negf %237 : vector<2x64xf32>
    %239 = math.exp %238 : vector<2x64xf32>
    %cst_76 = arith.constant 1.000000e+00 : f32
    %240 = vector.broadcast %cst_76 : f32 to vector<2x64xf32>
    %241 = arith.addf %240, %239 : vector<2x64xf32>
    %242 = arith.divf %240, %241 : vector<2x64xf32>
    %243 = vector.extract_strided_slice %236 {offsets = [0, 64], sizes = [2, 64], strides = [1, 1]} : vector<2x256xf32> to vector<2x64xf32>
    %244 = arith.negf %243 : vector<2x64xf32>
    %245 = math.exp %244 : vector<2x64xf32>
    %cst_77 = arith.constant 1.000000e+00 : f32
    %246 = vector.broadcast %cst_77 : f32 to vector<2x64xf32>
    %247 = arith.addf %246, %245 : vector<2x64xf32>
    %248 = arith.divf %246, %247 : vector<2x64xf32>
    %249 = vector.extract_strided_slice %236 {offsets = [0, 128], sizes = [2, 64], strides = [1, 1]} : vector<2x256xf32> to vector<2x64xf32>
    %250 = math.tanh %249 : vector<2x64xf32>
    %251 = vector.extract_strided_slice %236 {offsets = [0, 192], sizes = [2, 64], strides = [1, 1]} : vector<2x256xf32> to vector<2x64xf32>
    %252 = arith.negf %251 : vector<2x64xf32>
    %253 = math.exp %252 : vector<2x64xf32>
    %cst_78 = arith.constant 1.000000e+00 : f32
    %254 = vector.broadcast %cst_78 : f32 to vector<2x64xf32>
    %255 = arith.addf %254, %253 : vector<2x64xf32>
    %256 = arith.divf %254, %255 : vector<2x64xf32>
    %257 = arith.mulf %248, %227 : vector<2x64xf32>
    %258 = arith.mulf %242, %250 : vector<2x64xf32>
    %259 = arith.addf %257, %258 : vector<2x64xf32>
    %260 = math.tanh %259 : vector<2x64xf32>
    %261 = arith.mulf %256, %260 : vector<2x64xf32>
    %262 = vector.extract_strided_slice %261 {offsets = [0, 0], sizes = [2, 32], strides = [1, 1]} : vector<2x64xf32> to vector<2x32xf32>
    %c14_79 = arith.constant 14 : index
    %c0_80 = arith.constant 0 : index
    %263 = vector.load %arg8[%c14_79, %c0_80] : memref<16x64xf32, #tpu.memory_space<vmem>>, vector<2x32xf32>
    tpu.vector_store %arg8[%c14_79, %c0_80], %262 {strides = array<i32>} : memref<16x64xf32, #tpu.memory_space<vmem>>, vector<2x32xf32>,
    %264 = vector.extract_strided_slice %261 {offsets = [0, 32], sizes = [2, 32], strides = [1, 1]} : vector<2x64xf32> to vector<2x32xf32>
    %c0_81 = arith.constant 0 : index
    %c32_82 = arith.constant 32 : index
    %265 = vector.load %arg8[%c0_81, %c32_82] : memref<16x64xf32, #tpu.memory_space<vmem>>, vector<2x32xf32>
    tpu.vector_store %arg8[%c0_81, %c32_82], %264 {strides = array<i32>} : memref<16x64xf32, #tpu.memory_space<vmem>>, vector<2x32xf32>,
    %c0_83 = arith.constant 0 : index
    %c0_84 = arith.constant 0 : index
    %266 = vector.load %arg8[%c0_83, %c0_84] : memref<16x64xf32, #tpu.memory_space<vmem>>, vector<16x64xf32>
    %c0_85 = arith.constant 0 : index
    %c0_86 = arith.constant 0 : index
    %267 = vector.load %arg4[%c0_85, %c0_86] : memref<64x8xf32, #tpu.memory_space<vmem>>, vector<64x8xf32>
    %cst_87 = arith.constant dense<0.000000e+00> : vector<16x8xf32>
    %268 = tpu.matmul %266, %267, %cst_87 {dimension_numbers = #tpu.dot_dimension_numbers<[1], [0], [0], [1], [0, 0, 1, 1], [], []>} : vector<16x64xf32>, vector<64x8xf32>, vector<16x8xf32> -> vector<16x8xf32>
    %c0_88 = arith.constant 0 : index
    %c0_89 = arith.constant 0 : index
    %269 = vector.load %arg5[%c0_88, %c0_89] : memref<1x8xf32, #tpu.memory_space<vmem>>, vector<1x8xf32>
    %270 = vector.broadcast %269 : vector<1x8xf32> to vector<16x8xf32>
    %271 = arith.addf %268, %270 : vector<16x8xf32>
    %c0_90 = arith.constant 0 : index
    %c0_91 = arith.constant 0 : index
    %272 = vector.load %arg6[%c0_90, %c0_91] : memref<16x8xf32, #tpu.memory_space<vmem>>, vector<16x8xf32>
    tpu.vector_store %arg6[%c0_90, %c0_91], %271 {strides = array<i32>} : memref<16x8xf32, #tpu.memory_space<vmem>>, vector<16x8xf32>,
    return
  }
}

</mosaic_0001>

<llo_original>
// kernel: bilstm_crf_forward.1
$region0: #{bilstm_crf_forward.1}
  #allocation0 [shape = 'u32[]', space=smem, size = 0x4, offset = 0x4, fixed_abs, tag = 'smem constant byte address 0x4 - core index']
  #allocation1 [shape = 'u32[144,128]{1,0:T(1,128)}', space=vmem, size = 0x12000, scoped, tag = 'internal scratch']
  #allocation2 [shape = 'f32[16,256]{1,0:T(8,128)}', space=vmem, size = 0x4000, scoped, tag = 'scratch operand']
  #allocation3 [shape = 'f32[16,64]{1,0:T(8,128)}', space=vmem, size = 0x2000, scoped, tag = 'scratch operand']
  %s0 = inlined_call_operand.vmem [shape: f32[16,64], index: 0, kind: input, shape index: {}]
  %s1 = inlined_call_operand.vmem [shape: f32[64,256], index: 1, kind: input, shape index: {}]
  %s2 = inlined_call_operand.vmem [shape: f32[1,256], index: 2, kind: input, shape index: {}]
  %s3 = inlined_call_operand.vmem [shape: f32[64,256], index: 3, kind: input, shape index: {}]
  %s4 = inlined_call_operand.vmem [shape: f32[64,8], index: 4, kind: input, shape index: {}]
  %s5 = inlined_call_operand.vmem [shape: f32[1,8], index: 5, kind: input, shape index: {}]
  %s6 = inlined_call_operand.vmem [shape: f32[16,8], index: 6, kind: output, shape index: {}]
  %s7 = sld [smem:[#allocation0]]
  $region34: #{bilstm_crf_forward.1} parent=0
    _
  %s9 = ssub.s32 1, %s7
  %s10 = scalar_select 0, %s9, %s7
  // Predicated region
  $region2: #{bilstm_crf_forward.1} parent=0 // pred_check
    _
  $region3: #{bilstm_crf_forward.1} parent=0 // pred_check_branch
    %12 = sbr.rel (0) target = $region5
  $region4: #{bilstm_crf_forward.1} parent=0 // pred_region
    _
  $region5: #{bilstm_crf_forward.1} parent=0 // pred_fallthru
    _
  // Predicated region
  $region6: #{bilstm_crf_forward.1} parent=0 // pred_check
    _
  $region7: #{bilstm_crf_forward.1} parent=0 // pred_check_branch
    %14 = sbr.rel (0) target = $region9
  $region8: #{bilstm_crf_forward.1} parent=0 // pred_region
    _
  $region9: #{bilstm_crf_forward.1} parent=0 // pred_fallthru
    _
  // Predicated region
  $region10: #{bilstm_crf_forward.1} parent=0 // pred_check
    _
  $region11: #{bilstm_crf_forward.1} parent=0 // pred_check_branch
    %16 = sbr.rel (0) target = $region13
  $region12: #{bilstm_crf_forward.1} parent=0 // pred_region
    _
  $region13: #{bilstm_crf_forward.1} parent=0 // pred_fallthru
    _
  // Predicated region
  $region14: #{bilstm_crf_forward.1} parent=0 // pred_check
    _
  $region15: #{bilstm_crf_forward.1} parent=0 // pred_check_branch
    %18 = sbr.rel (0) target = $region17
  $region16: #{bilstm_crf_forward.1} parent=0 // pred_region
    _
  $region17: #{bilstm_crf_forward.1} parent=0 // pred_fallthru
    _
  // Predicated region
  $region18: #{bilstm_crf_forward.1} parent=0 // pred_check
    _
  $region19: #{bilstm_crf_forward.1} parent=0 // pred_check_branch
    %20 = sbr.rel (0) target = $region21
  $region20: #{bilstm_crf_forward.1} parent=0 // pred_region
    _
  $region21: #{bilstm_crf_forward.1} parent=0 // pred_fallthru
    _
  // Predicated region
  $region22: #{bilstm_crf_forward.1} parent=0 // pred_check
    _
  $region23: #{bilstm_crf_forward.1} parent=0 // pred_check_branch
    %22 = sbr.rel (0) target = $region25
  $region24: #{bilstm_crf_forward.1} parent=0 // pred_region
    _
  $region25: #{bilstm_crf_forward.1} parent=0 // pred_fallthru
    _
  %v23 = vld [vmem:[%s0] sm:$0xff]
  %v24 = vld [vmem:[%s0 + $0x8] sm:$0xff]
  %v25 = vld [vmem:[%s1] sm:$0xff]
  %v26 = vld [vmem:[%s1 + $0x8] sm:$0xff]
  %v27 = vld [vmem:[%s1 + $0x10] sm:$0xff]
  %v28 = vld [vmem:[%s1 + $0x18] sm:$0xff]
  %v29 = vld [vmem:[%s1 + $0x20] sm:$0xff]
  %v30 = vld [vmem:[%s1 + $0x28] sm:$0xff]
  %v31 = vld [vmem:[%s1 + $0x30] sm:$0xff]
  %v32 = vld [vmem:[%s1 + $0x38] sm:$0xff]
  %v33 = vld [vmem:[%s1 + $0x40] sm:$0xff]
  %v34 = vld [vmem:[%s1 + $0x48] sm:$0xff]
  %v35 = vld [vmem:[%s1 + $0x50] sm:$0xff]
  %v36 = vld [vmem:[%s1 + $0x58] sm:$0xff]
  %v37 = vld [vmem:[%s1 + $0x60] sm:$0xff]
  %v38 = vld [vmem:[%s1 + $0x68] sm:$0xff]
  %v39 = vld [vmem:[%s1 + $0x70] sm:$0xff]
  %v40 = vld [vmem:[%s1 + $0x78] sm:$0xff]
  %v41 = vld [vmem:[%s2] sm:$0x3]
  %v43 = vlaneseq
  %v44 = vshrl.u32 %v43, 7
  %v45 = vsub.s32 0, %v44
  %v46 = vrot.slane %v41, %v45
  %v47 = vlaneseq
  %v48 = vshrl.u32 %v47, 7
  %v49 = vsub.s32 1, %v48
  %v50 = vrot.slane %v41, %v49
  %vm53 = vcmask 523264
  %v55 = vsel %vm53, %v23, 0
  %v58 = vsel %vm53, %v24, 0
  %60 = vmatprep.subr.mxu0 %v26
  %61 = vmatpush1.msra.mxu0 %v25
  %62 = vmatprep.subr.mxu0 %v28
  %63 = vmatpush1.msra.mxu0 %v27
  %64 = vmatprep.subr.mxu0 %v30
  %65 = vmatpush1.msra.mxu0 %v29
  %66 = vmatprep.subr.mxu0 %v32
  %67 = vmatpush1.msra.mxu0 %v31
  %68 = vmatprep.subr.mxu0 %v34
  %69 = vmatpush1.msra.mxu0 %v33
  %70 = vmatprep.subr.mxu0 %v36
  %71 = vmatpush1.msra.mxu0 %v35
  %72 = vmatprep.subr.mxu0 %v38
  %73 = vmatpush1.msra.mxu0 %v37
  %74 = vmatprep.subr.mxu0 %v40
  %75 = vmatpush1.msra.mxu0 %v39
  %76 = vmatprep.subr.mxu0 0.0
  %77 = vmatpush1.msra.mxu0 0.0
  %78 = vmatprep.subr.mxu0 0.0
  %79 = vmatpush1.msra.mxu0 0.0
  %80 = vmatprep.subr.mxu0 0.0
  %81 = vmatpush1.msra.mxu0 0.0
  %82 = vmatprep.subr.mxu0 0.0
  %83 = vmatpush1.msra.mxu0 0.0
  %84 = vmatprep.subr.mxu0 0.0
  %85 = vmatpush1.msra.mxu0 0.0
  %86 = vmatprep.subr.mxu0 0.0
  %87 = vmatpush1.msra.mxu0 0.0
  %88 = vmatprep.subr.mxu0 0.0
  %89 = vmatpush1.msra.mxu0 0.0
  %90 = vmatprep.subr.mxu0 0.0
  %91 = vmatpush1.msra.mxu0 0.0
  %92 = vmatprep.subr.mxu0 0.0
  %93 = vmatpush1.msra.mxu0 0.0
  %94 = vmatprep.subr.mxu0 0.0
  %95 = vmatpush1.msra.mxu0 0.0
  %96 = vmatprep.subr.mxu0 0.0
  %97 = vmatpush1.msra.mxu0 0.0
  %98 = vmatprep.subr.mxu0 0.0
  %99 = vmatpush1.msra.mxu0 0.0
  %100 = vmatprep.subr.mxu0 0.0
  %101 = vmatpush1.msra.mxu0 0.0
  %102 = vmatprep.subr.mxu0 0.0
  %103 = vmatpush1.msra.mxu0 0.0
  %104 = vmatprep.subr.mxu0 0.0
  %105 = vmatpush1.msra.mxu0 0.0
  %106 = vmatprep.subr.mxu0 0.0
  %107 = vmatpush1.msra.mxu0 0.0
  %108 = vmatprep.subr.mxu0 0.0
  %109 = vmatpush1.msra.mxu0 0.0
  %110 = vmatprep.subr.mxu0 0.0
  %111 = vmatpush1.msra.mxu0 0.0
  %112 = vmatprep.subr.mxu0 0.0
  %113 = vmatpush1.msra.mxu0 0.0
  %114 = vmatprep.subr.mxu0 0.0
  %115 = vmatpush1.msra.mxu0 0.0
  %116 = vmatprep.subr.mxu0 0.0
  %117 = vmatpush1.msra.mxu0 0.0
  %118 = vmatprep.subr.mxu0 0.0
  %119 = vmatpush1.msra.mxu0 0.0
  %120 = vmatprep.subr.mxu0 0.0
  %121 = vmatpush1.msra.mxu0 0.0
  %122 = vmatprep.subr.mxu0 0.0
  %123 = vmatpush1.msra.mxu0 0.0
  %124 = vmatprep.mubr.f32.mxu0 0.0
  %125 = vmatmul.mubr.f32.gmra.mrb[0].mxu0 %v55
  %v126 = vpop.f32.mrb[0].mxu0
  %v127 = vadd.f32 %v46, %v126
  %v128 = vpop.f32.mrb[0].mxu0
  %v129 = vadd.f32 %v50, %v128
  %130 = vmatprep.mubr.f32.mxu0 0.0
  %131 = vmatmul.mubr.f32.gmra.mrb[0].mxu0 %v58
  %v132 = vpop.f32.mrb[0].mxu0
  %v133 = vadd.f32 %v46, %v132
  %v134 = vpop.f32.mrb[0].mxu0
  %v135 = vadd.f32 %v50, %v134
  %136 = vdwg.mxu0
  %137 = vst [vmem:[#allocation2] sm:$0xff] %v127
  %138 = vst [vmem:[#allocation2 + $0x8] sm:$0xff] %v129
  %139 = vst [vmem:[#allocation2 + $0x10] sm:$0xff] %v133
  %140 = vst [vmem:[#allocation2 + $0x18] sm:$0xff] %v135
  %v141 = vld [vmem:[%s3] sm:$0xff]
  %v142 = vld [vmem:[%s3 + $0x8] sm:$0xff]
  %v143 = vld [vmem:[%s3 + $0x10] sm:$0xff]
  %v144 = vld [vmem:[%s3 + $0x18] sm:$0xff]
  %v145 = vld [vmem:[%s3 + $0x20] sm:$0xff]
  %v146 = vld [vmem:[%s3 + $0x28] sm:$0xff]
  %v147 = vld [vmem:[%s3 + $0x30] sm:$0xff]
  %v148 = vld [vmem:[%s3 + $0x38] sm:$0xff]
  %v149 = vld [vmem:[%s3 + $0x40] sm:$0xff]
  %v150 = vld [vmem:[%s3 + $0x48] sm:$0xff]
  %v151 = vld [vmem:[%s3 + $0x50] sm:$0xff]
  %v152 = vld [vmem:[%s3 + $0x58] sm:$0xff]
  %v153 = vld [vmem:[%s3 + $0x60] sm:$0xff]
  %v154 = vld [vmem:[%s3 + $0x68] sm:$0xff]
  %v155 = vld [vmem:[%s3 + $0x70] sm:$0xff]
  %v156 = vld [vmem:[%s3 + $0x78] sm:$0xff]
  %v157 = vld [vmem:[#allocation2] sm:$0x3]
  %v158 = vld [vmem:[#allocation2 + $0x8] sm:$0x3]
  %v160 = vsel %vm53, 0.0, 0
  %162 = vmatprep.subr.mxu0 %v142
  %163 = vmatpush1.msra.mxu0 %v141
  %164 = vmatprep.subr.mxu0 %v144
  %165 = vmatpush1.msra.mxu0 %v143
  %166 = vmatprep.subr.mxu0 %v146
  %167 = vmatpush1.msra.mxu0 %v145
  %168 = vmatprep.subr.mxu0 %v148
  %169 = vmatpush1.msra.mxu0 %v147
  %170 = vmatprep.subr.mxu0 %v150
  %171 = vmatpush1.msra.mxu0 %v149
  %172 = vmatprep.subr.mxu0 %v152
  %173 = vmatpush1.msra.mxu0 %v151
  %174 = vmatprep.subr.mxu0 %v154
  %175 = vmatpush1.msra.mxu0 %v153
  %176 = vmatprep.subr.mxu0 %v156
  %177 = vmatpush1.msra.mxu0 %v155
  %178 = vmatprep.subr.mxu0 0.0
  %179 = vmatpush1.msra.mxu0 0.0
  %180 = vmatprep.subr.mxu0 0.0
  %181 = vmatpush1.msra.mxu0 0.0
  %182 = vmatprep.subr.mxu0 0.0
  %183 = vmatpush1.msra.mxu0 0.0
  %184 = vmatprep.subr.mxu0 0.0
  %185 = vmatpush1.msra.mxu0 0.0
  %186 = vmatprep.subr.mxu0 0.0
  %187 = vmatpush1.msra.mxu0 0.0
  %188 = vmatprep.subr.mxu0 0.0
  %189 = vmatpush1.msra.mxu0 0.0
  %190 = vmatprep.subr.mxu0 0.0
  %191 = vmatpush1.msra.mxu0 0.0
  %192 = vmatprep.subr.mxu0 0.0
  %193 = vmatpush1.msra.mxu0 0.0
  %194 = vmatprep.subr.mxu0 0.0
  %195 = vmatpush1.msra.mxu0 0.0
  %196 = vmatprep.subr.mxu0 0.0
  %197 = vmatpush1.msra.mxu0 0.0
  %198 = vmatprep.subr.mxu0 0.0
  %199 = vmatpush1.msra.mxu0 0.0
  %200 = vmatprep.subr.mxu0 0.0
  %201 = vmatpush1.msra.mxu0 0.0
  %202 = vmatprep.subr.mxu0 0.0
  %203 = vmatpush1.msra.mxu0 0.0
  %204 = vmatprep.subr.mxu0 0.0
  %205 = vmatpush1.msra.mxu0 0.0
  %206 = vmatprep.subr.mxu0 0.0
  %207 = vmatpush1.msra.mxu0 0.0
  %208 = vmatprep.subr.mxu0 0.0
  %209 = vmatpush1.msra.mxu0 0.0
  %210 = vmatprep.subr.mxu0 0.0
  %211 = vmatpush1.msra.mxu0 0.0
  %212 = vmatprep.subr.mxu0 0.0
  %213 = vmatpush1.msra.mxu0 0.0
  %214 = vmatprep.subr.mxu0 0.0
  %215 = vmatpush1.msra.mxu0 0.0
  %216 = vmatprep.subr.mxu0 0.0
  %217 = vmatpush1.msra.mxu0 0.0
  %218 = vmatprep.subr.mxu0 0.0
  %219 = vmatpush1.msra.mxu0 0.0
  %220 = vmatprep.subr.mxu0 0.0
  %221 = vmatpush1.msra.mxu0 0.0
  %222 = vmatprep.subr.mxu0 0.0
  %223 = vmatpush1.msra.mxu0 0.0
  %224 = vmatprep.subr.mxu0 0.0
  %225 = vmatpush1.msra.mxu0 0.0
  %226 = vmatprep.mubr.f32.mxu0 0.0
  %227 = vmatmul.mubr.f32.gmra.mrb[0].mxu0 %v160
  %v228 = vpop.f32.mrb[0].mxu0
  %v229 = vadd.f32 0.0, %v228
  %v230 = vpop.f32.mrb[0].mxu0
  %v231 = vadd.f32 0.0, %v230
  %232 = vdwg.mxu0
  %v233 = vadd.f32 %v157, %v229
  %v234 = vadd.f32 %v158, %v231
  %v235 = vxor.u32 %v233, 2147483648
  %v236 = vmul.f32 %v235, 1.442695
  %v237 = vpow.pop %v236
  %v238 = vadd.f32 %v237, 1.0
  %v239 = vrcp.pop %v238
  %v240 = vmul.f32 1.0, %v239
  %v241 = vtanh.pop %v234
  %v242 = vxor.u32 %v234, 2147483648
  %v243 = vmul.f32 %v242, 1.442695
  %v244 = vpow.pop %v243
  %v245 = vadd.f32 %v244, 1.0
  %v246 = vrcp.pop %v245
  %v247 = vmul.f32 1.0, %v246
  %v248 = vmul.f32 %v240, 0.0
  %v249 = vmul.f32 %v240, %v241
  %251 = vrot.lane.b32.xlu0 %v249, 64
  %v252 = vpop.permute.xlu0 %251
  %v254 = vadd.f32 %v248, %v252
  %v255 = vtanh.pop %v254
  %v256 = vmul.f32 %v247, %v255
  %258 = vrot.lane.b32.xlu0 %v256, 64
  %v259 = vpop.permute.xlu0 %258
  %vm261 = vcmask 254976
  %262 = vst.msk [vmem:[#allocation3] sm:$0x3] %vm261, %v259
  %vm263 = vcmask 517376
  %264 = vst.msk [vmem:[#allocation3 + $0xe] sm:$0x3] %vm263, %v259
  %v265 = vld [vmem:[#allocation2] sm:$0xc]
  %v266 = vld [vmem:[#allocation2 + $0x8] sm:$0xc]
  %v267 = vsel %vm53, %v259, 0
  %269 = vmatprep.subr.mxu0 %v142
  %270 = vmatpush1.msra.mxu0 %v141
  %271 = vmatprep.subr.mxu0 %v144
  %272 = vmatpush1.msra.mxu0 %v143
  %273 = vmatprep.subr.mxu0 %v146
  %274 = vmatpush1.msra.mxu0 %v145
  %275 = vmatprep.subr.mxu0 %v148
  %276 = vmatpush1.msra.mxu0 %v147
  %277 = vmatprep.subr.mxu0 %v150
  %278 = vmatpush1.msra.mxu0 %v149
  %279 = vmatprep.subr.mxu0 %v152
  %280 = vmatpush1.msra.mxu0 %v151
  %281 = vmatprep.subr.mxu0 %v154
  %282 = vmatpush1.msra.mxu0 %v153
  %283 = vmatprep.subr.mxu0 %v156
  %284 = vmatpush1.msra.mxu0 %v155
  %285 = vmatprep.subr.mxu0 0.0
  %286 = vmatpush1.msra.mxu0 0.0
  %287 = vmatprep.subr.mxu0 0.0
  %288 = vmatpush1.msra.mxu0 0.0
  %289 = vmatprep.subr.mxu0 0.0
  %290 = vmatpush1.msra.mxu0 0.0
  %291 = vmatprep.subr.mxu0 0.0
  %292 = vmatpush1.msra.mxu0 0.0
  %293 = vmatprep.subr.mxu0 0.0
  %294 = vmatpush1.msra.mxu0 0.0
  %295 = vmatprep.subr.mxu0 0.0
  %296 = vmatpush1.msra.mxu0 0.0
  %297 = vmatprep.subr.mxu0 0.0
  %298 = vmatpush1.msra.mxu0 0.0
  %299 = vmatprep.subr.mxu0 0.0
  %300 = vmatpush1.msra.mxu0 0.0
  %301 = vmatprep.subr.mxu0 0.0
  %302 = vmatpush1.msra.mxu0 0.0
  %303 = vmatprep.subr.mxu0 0.0
  %304 = vmatpush1.msra.mxu0 0.0
  %305 = vmatprep.subr.mxu0 0.0
  %306 = vmatpush1.msra.mxu0 0.0
  %307 = vmatprep.subr.mxu0 0.0
  %308 = vmatpush1.msra.mxu0 0.0
  %309 = vmatprep.subr.mxu0 0.0
  %310 = vmatpush1.msra.mxu0 0.0
  %311 = vmatprep.subr.mxu0 0.0
  %312 = vmatpush1.msra.mxu0 0.0
  %313 = vmatprep.subr.mxu0 0.0
  %314 = vmatpush1.msra.mxu0 0.0
  %315 = vmatprep.subr.mxu0 0.0
  %316 = vmatpush1.msra.mxu0 0.0
  %317 = vmatprep.subr.mxu0 0.0
  %318 = vmatpush1.msra.mxu0 0.0
  %319 = vmatprep.subr.mxu0 0.0
  %320 = vmatpush1.msra.mxu0 0.0
  %321 = vmatprep.subr.mxu0 0.0
  %322 = vmatpush1.msra.mxu0 0.0
  %323 = vmatprep.subr.mxu0 0.0
  %324 = vmatpush1.msra.mxu0 0.0
  %325 = vmatprep.subr.mxu0 0.0
  %326 = vmatpush1.msra.mxu0 0.0
  %327 = vmatprep.subr.mxu0 0.0
  %328 = vmatpush1.msra.mxu0 0.0
  %329 = vmatprep.subr.mxu0 0.0
  %330 = vmatpush1.msra.mxu0 0.0
  %331 = vmatprep.subr.mxu0 0.0
  %332 = vmatpush1.msra.mxu0 0.0
  %333 = vmatprep.mubr.f32.mxu0 0.0
  %334 = vmatmul.mubr.f32.gmra.mrb[0].mxu0 %v267
  %v335 = vpop.f32.mrb[0].mxu0
  %v336 = vadd.f32 0.0, %v335
  %v337 = vpop.f32.mrb[0].mxu0
  %v338 = vadd.f32 0.0, %v337
  %339 = vdwg.mxu0
  %v342 = vrot.slane %v336, 6
  %v343 = vrot.slane %v338, 6
  %v346 = vadd.f32 %v265, %v342
  %v347 = vadd.f32 %v266, %v343
  %v348 = vxor.u32 %v346, 2147483648
  %v349 = vmul.f32 %v348, 1.442695
  %v350 = vpow.pop %v349
  %v351 = vadd.f32 %v350, 1.0
  %v352 = vrcp.pop %v351
  %v353 = vmul.f32 1.0, %v352
  %v354 = vtanh.pop %v347
  %v355 = vxor.u32 %v347, 2147483648
  %v356 = vmul.f32 %v355, 1.442695
  %v357 = vpow.pop %v356
  %v358 = vadd.f32 %v357, 1.0
  %v359 = vrcp.pop %v358
  %v360 = vmul.f32 1.0, %v359
  %v362 = vrot.slane %v254, 6
  %v364 = vmul.f32 %v353, %v362
  %v365 = vmul.f32 %v353, %v354
  %367 = vrot.lane.b32.xlu0 %v365, 64
  %v368 = vpop.permute.xlu0 %367
  %v370 = vadd.f32 %v364, %v368
  %v371 = vtanh.pop %v370
  %v372 = vmul.f32 %v360, %v371
  %374 = vrot.lane.b32.xlu0 %v372, 64
  %v375 = vpop.permute.xlu0 %374
  %vm377 = vcmask 257026
  %378 = vst.msk [vmem:[#allocation3] sm:$0xc] %vm377, %v375
  %vm379 = vcmask 519426
  %380 = vst.msk [vmem:[#allocation3 + $0xa] sm:$0xc] %vm379, %v375
  %v381 = vld [vmem:[#allocation2] sm:$0x30]
  %v382 = vld [vmem:[#allocation2 + $0x8] sm:$0x30]
  %v383 = vrot.slane %v372, 2
  %384 = vrot.lane.b32.xlu0 %v383, 64
  %v385 = vpop.permute.xlu0 %384
  %v386 = vsel %vm53, %v385, 0
  %388 = vmatprep.subr.mxu0 %v142
  %389 = vmatpush1.msra.mxu0 %v141
  %390 = vmatprep.subr.mxu0 %v144
  %391 = vmatpush1.msra.mxu0 %v143
  %392 = vmatprep.subr.mxu0 %v146
  %393 = vmatpush1.msra.mxu0 %v145
  %394 = vmatprep.subr.mxu0 %v148
  %395 = vmatpush1.msra.mxu0 %v147
  %396 = vmatprep.subr.mxu0 %v150
  %397 = vmatpush1.msra.mxu0 %v149
  %398 = vmatprep.subr.mxu0 %v152
  %399 = vmatpush1.msra.mxu0 %v151
  %400 = vmatprep.subr.mxu0 %v154
  %401 = vmatpush1.msra.mxu0 %v153
  %402 = vmatprep.subr.mxu0 %v156
  %403 = vmatpush1.msra.mxu0 %v155
  %404 = vmatprep.subr.mxu0 0.0
  %405 = vmatpush1.msra.mxu0 0.0
  %406 = vmatprep.subr.mxu0 0.0
  %407 = vmatpush1.msra.mxu0 0.0
  %408 = vmatprep.subr.mxu0 0.0
  %409 = vmatpush1.msra.mxu0 0.0
  %410 = vmatprep.subr.mxu0 0.0
  %411 = vmatpush1.msra.mxu0 0.0
  %412 = vmatprep.subr.mxu0 0.0
  %413 = vmatpush1.msra.mxu0 0.0
  %414 = vmatprep.subr.mxu0 0.0
  %415 = vmatpush1.msra.mxu0 0.0
  %416 = vmatprep.subr.mxu0 0.0
  %417 = vmatpush1.msra.mxu0 0.0
  %418 = vmatprep.subr.mxu0 0.0
  %419 = vmatpush1.msra.mxu0 0.0
  %420 = vmatprep.subr.mxu0 0.0
  %421 = vmatpush1.msra.mxu0 0.0
  %422 = vmatprep.subr.mxu0 0.0
  %423 = vmatpush1.msra.mxu0 0.0
  %424 = vmatprep.subr.mxu0 0.0
  %425 = vmatpush1.msra.mxu0 0.0
  %426 = vmatprep.subr.mxu0 0.0
  %427 = vmatpush1.msra.mxu0 0.0
  %428 = vmatprep.subr.mxu0 0.0
  %429 = vmatpush1.msra.mxu0 0.0
  %430 = vmatprep.subr.mxu0 0.0
  %431 = vmatpush1.msra.mxu0 0.0
  %432 = vmatprep.subr.mxu0 0.0
  %433 = vmatpush1.msra.mxu0 0.0
  %434 = vmatprep.subr.mxu0 0.0
  %435 = vmatpush1.msra.mxu0 0.0
  %436 = vmatprep.subr.mxu0 0.0
  %437 = vmatpush1.msra.mxu0 0.0
  %438 = vmatprep.subr.mxu0 0.0
  %439 = vmatpush1.msra.mxu0 0.0
  %440 = vmatprep.subr.mxu0 0.0
  %441 = vmatpush1.msra.mxu0 0.0
  %442 = vmatprep.subr.mxu0 0.0
  %443 = vmatpush1.msra.mxu0 0.0
  %444 = vmatprep.subr.mxu0 0.0
  %445 = vmatpush1.msra.mxu0 0.0
  %446 = vmatprep.subr.mxu0 0.0
  %447 = vmatpush1.msra.mxu0 0.0
  %448 = vmatprep.subr.mxu0 0.0
  %449 = vmatpush1.msra.mxu0 0.0
  %450 = vmatprep.subr.mxu0 0.0
  %451 = vmatpush1.msra.mxu0 0.0
  %452 = vmatprep.mubr.f32.mxu0 0.0
  %453 = vmatmul.mubr.f32.gmra.mrb[0].mxu0 %v386
  %v454 = vpop.f32.mrb[0].mxu0
  %v455 = vadd.f32 0.0, %v454
  %v456 = vpop.f32.mrb[0].mxu0
  %v457 = vadd.f32 0.0, %v456
  %458 = vdwg.mxu0
  %v461 = vrot.slane %v455, 4
  %v462 = vrot.slane %v457, 4
  %v465 = vadd.f32 %v381, %v461
  %v466 = vadd.f32 %v382, %v462
  %v467 = vxor.u32 %v465, 2147483648
  %v468 = vmul.f32 %v467, 1.442695
  %v469 = vpow.pop %v468
  %v470 = vadd.f32 %v469, 1.0
  %v471 = vrcp.pop %v470
  %v472 = vmul.f32 1.0, %v471
  %v473 = vtanh.pop %v466
  %v474 = vxor.u32 %v466, 2147483648
  %v475 = vmul.f32 %v474, 1.442695
  %v476 = vpow.pop %v475
  %v477 = vadd.f32 %v476, 1.0
  %v478 = vrcp.pop %v477
  %v479 = vmul.f32 1.0, %v478
  %v481 = vrot.slane %v370, 6
  %v483 = vmul.f32 %v472, %v481
  %v484 = vmul.f32 %v472, %v473
  %486 = vrot.lane.b32.xlu0 %v484, 64
  %v487 = vpop.permute.xlu0 %486
  %v489 = vadd.f32 %v483, %v487
  %v490 = vtanh.pop %v489
  %v491 = vmul.f32 %v479, %v490
  %493 = vrot.lane.b32.xlu0 %v491, 64
  %v494 = vpop.permute.xlu0 %493
  %vm496 = vcmask 259076
  %497 = vst.msk [vmem:[#allocation3] sm:$0x30] %vm496, %v494
  %vm498 = vcmask 521476
  %499 = vst.msk [vmem:[#allocation3 + $0x6] sm:$0x30] %vm498, %v494
  %v500 = vld [vmem:[#allocation2] sm:$0xc0]
  %v501 = vld [vmem:[#allocation2 + $0x8] sm:$0xc0]
  %v502 = vrot.slane %v491, 4
  %503 = vrot.lane.b32.xlu0 %v502, 64
  %v504 = vpop.permute.xlu0 %503
  %v505 = vsel %vm53, %v504, 0
  %507 = vmatprep.subr.mxu0 %v142
  %508 = vmatpush1.msra.mxu0 %v141
  %509 = vmatprep.subr.mxu0 %v144
  %510 = vmatpush1.msra.mxu0 %v143
  %511 = vmatprep.subr.mxu0 %v146
  %512 = vmatpush1.msra.mxu0 %v145
  %513 = vmatprep.subr.mxu0 %v148
  %514 = vmatpush1.msra.mxu0 %v147
  %515 = vmatprep.subr.mxu0 %v150
  %516 = vmatpush1.msra.mxu0 %v149
  %517 = vmatprep.subr.mxu0 %v152
  %518 = vmatpush1.msra.mxu0 %v151
  %519 = vmatprep.subr.mxu0 %v154
  %520 = vmatpush1.msra.mxu0 %v153
  %521 = vmatprep.subr.mxu0 %v156
  %522 = vmatpush1.msra.mxu0 %v155
  %523 = vmatprep.subr.mxu0 0.0
  %524 = vmatpush1.msra.mxu0 0.0
  %525 = vmatprep.subr.mxu0 0.0
  %526 = vmatpush1.msra.mxu0 0.0
  %527 = vmatprep.subr.mxu0 0.0
  %528 = vmatpush1.msra.mxu0 0.0
  %529 = vmatprep.subr.mxu0 0.0
  %530 = vmatpush1.msra.mxu0 0.0
  %531 = vmatprep.subr.mxu0 0.0
  %532 = vmatpush1.msra.mxu0 0.0
  %533 = vmatprep.subr.mxu0 0.0
  %534 = vmatpush1.msra.mxu0 0.0
  %535 = vmatprep.subr.mxu0 0.0
  %536 = vmatpush1.msra.mxu0 0.0
  %537 = vmatprep.subr.mxu0 0.0
  %538 = vmatpush1.msra.mxu0 0.0
  %539 = vmatprep.subr.mxu0 0.0
  %540 = vmatpush1.msra.mxu0 0.0
  %541 = vmatprep.subr.mxu0 0.0
  %542 = vmatpush1.msra.mxu0 0.0
  %543 = vmatprep.subr.mxu0 0.0
  %544 = vmatpush1.msra.mxu0 0.0
  %545 = vmatprep.subr.mxu0 0.0
  %546 = vmatpush1.msra.mxu0 0.0
  %547 = vmatprep.subr.mxu0 0.0
  %548 = vmatpush1.msra.mxu0 0.0
  %549 = vmatprep.subr.mxu0 0.0
  %550 = vmatpush1.msra.mxu0 0.0
  %551 = vmatprep.subr.mxu0 0.0
  %552 = vmatpush1.msra.mxu0 0.0
  %553 = vmatprep.subr.mxu0 0.0
  %554 = vmatpush1.msra.mxu0 0.0
  %555 = vmatprep.subr.mxu0 0.0
  %556 = vmatpush1.msra.mxu0 0.0
  %557 = vmatprep.subr.mxu0 0.0
  %558 = vmatpush1.msra.mxu0 0.0
  %559 = vmatprep.subr.mxu0 0.0
  %560 = vmatpush1.msra.mxu0 0.0
  %561 = vmatprep.subr.mxu0 0.0
  %562 = vmatpush1.msra.mxu0 0.0
  %563 = vmatprep.subr.mxu0 0.0
  %564 = vmatpush1.msra.mxu0 0.0
  %565 = vmatprep.subr.mxu0 0.0
  %566 = vmatpush1.msra.mxu0 0.0
  %567 = vmatprep.subr.mxu0 0.0
  %568 = vmatpush1.msra.mxu0 0.0
  %569 = vmatprep.subr.mxu0 0.0
  %570 = vmatpush1.msra.mxu0 0.0
  %571 = vmatprep.mubr.f32.mxu0 0.0
  %572 = vmatmul.mubr.f32.gmra.mrb[0].mxu0 %v505
  %v573 = vpop.f32.mrb[0].mxu0
  %v574 = vadd.f32 0.0, %v573
  %v575 = vpop.f32.mrb[0].mxu0
  %v576 = vadd.f32 0.0, %v575
  %577 = vdwg.mxu0
  %v580 = vrot.slane %v574, 2
  %v581 = vrot.slane %v576, 2
  %v584 = vadd.f32 %v500, %v580
  %v585 = vadd.f32 %v501, %v581
  %v586 = vxor.u32 %v584, 2147483648
  %v587 = vmul.f32 %v586, 1.442695
  %v588 = vpow.pop %v587
  %v589 = vadd.f32 %v588, 1.0
  %v590 = vrcp.pop %v589
  %v591 = vmul.f32 1.0, %v590
  %v592 = vtanh.pop %v585
  %v593 = vxor.u32 %v585, 2147483648
  %v594 = vmul.f32 %v593, 1.442695
  %v595 = vpow.pop %v594
  %v596 = vadd.f32 %v595, 1.0
  %v597 = vrcp.pop %v596
  %v598 = vmul.f32 1.0, %v597
  %v600 = vrot.slane %v489, 6
  %v602 = vmul.f32 %v591, %v600
  %v603 = vmul.f32 %v591, %v592
  %605 = vrot.lane.b32.xlu0 %v603, 64
  %v606 = vpop.permute.xlu0 %605
  %v608 = vadd.f32 %v602, %v606
  %v609 = vtanh.pop %v608
  %v610 = vmul.f32 %v598, %v609
  %612 = vrot.lane.b32.xlu0 %v610, 64
  %v613 = vpop.permute.xlu0 %612
  %vm615 = vcmask 261126
  %616 = vst.msk [vmem:[#allocation3] sm:$0xc0] %vm615, %v613
  %vm617 = vcmask 523526
  %618 = vst.msk [vmem:[#allocation3 + $0x2] sm:$0xc0] %vm617, %v613
  %v619 = vld [vmem:[#allocation2 + $0x10] sm:$0x3]
  %v620 = vld [vmem:[#allocation2 + $0x18] sm:$0x3]
  %v621 = vrot.slane %v610, 6
  %622 = vrot.lane.b32.xlu0 %v621, 64
  %v623 = vpop.permute.xlu0 %622
  %v624 = vsel %vm53, %v623, 0
  %626 = vmatprep.subr.mxu0 %v142
  %627 = vmatpush1.msra.mxu0 %v141
  %628 = vmatprep.subr.mxu0 %v144
  %629 = vmatpush1.msra.mxu0 %v143
  %630 = vmatprep.subr.mxu0 %v146
  %631 = vmatpush1.msra.mxu0 %v145
  %632 = vmatprep.subr.mxu0 %v148
  %633 = vmatpush1.msra.mxu0 %v147
  %634 = vmatprep.subr.mxu0 %v150
  %635 = vmatpush1.msra.mxu0 %v149
  %636 = vmatprep.subr.mxu0 %v152
  %637 = vmatpush1.msra.mxu0 %v151
  %638 = vmatprep.subr.mxu0 %v154
  %639 = vmatpush1.msra.mxu0 %v153
  %640 = vmatprep.subr.mxu0 %v156
  %641 = vmatpush1.msra.mxu0 %v155
  %642 = vmatprep.subr.mxu0 0.0
  %643 = vmatpush1.msra.mxu0 0.0
  %644 = vmatprep.subr.mxu0 0.0
  %645 = vmatpush1.msra.mxu0 0.0
  %646 = vmatprep.subr.mxu0 0.0
  %647 = vmatpush1.msra.mxu0 0.0
  %648 = vmatprep.subr.mxu0 0.0
  %649 = vmatpush1.msra.mxu0 0.0
  %650 = vmatprep.subr.mxu0 0.0
  %651 = vmatpush1.msra.mxu0 0.0
  %652 = vmatprep.subr.mxu0 0.0
  %653 = vmatpush1.msra.mxu0 0.0
  %654 = vmatprep.subr.mxu0 0.0
  %655 = vmatpush1.msra.mxu0 0.0
  %656 = vmatprep.subr.mxu0 0.0
  %657 = vmatpush1.msra.mxu0 0.0
  %658 = vmatprep.subr.mxu0 0.0
  %659 = vmatpush1.msra.mxu0 0.0
  %660 = vmatprep.subr.mxu0 0.0
  %661 = vmatpush1.msra.mxu0 0.0
  %662 = vmatprep.subr.mxu0 0.0
  %663 = vmatpush1.msra.mxu0 0.0
  %664 = vmatprep.subr.mxu0 0.0
  %665 = vmatpush1.msra.mxu0 0.0
  %666 = vmatprep.subr.mxu0 0.0
  %667 = vmatpush1.msra.mxu0 0.0
  %668 = vmatprep.subr.mxu0 0.0
  %669 = vmatpush1.msra.mxu0 0.0
  %670 = vmatprep.subr.mxu0 0.0
  %671 = vmatpush1.msra.mxu0 0.0
  %672 = vmatprep.subr.mxu0 0.0
  %673 = vmatpush1.msra.mxu0 0.0
  %674 = vmatprep.subr.mxu0 0.0
  %675 = vmatpush1.msra.mxu0 0.0
  %676 = vmatprep.subr.mxu0 0.0
  %677 = vmatpush1.msra.mxu0 0.0
  %678 = vmatprep.subr.mxu0 0.0
  %679 = vmatpush1.msra.mxu0 0.0
  %680 = vmatprep.subr.mxu0 0.0
  %681 = vmatpush1.msra.mxu0 0.0
  %682 = vmatprep.subr.mxu0 0.0
  %683 = vmatpush1.msra.mxu0 0.0
  %684 = vmatprep.subr.mxu0 0.0
  %685 = vmatpush1.msra.mxu0 0.0
  %686 = vmatprep.subr.mxu0 0.0
  %687 = vmatpush1.msra.mxu0 0.0
  %688 = vmatprep.subr.mxu0 0.0
  %689 = vmatpush1.msra.mxu0 0.0
  %690 = vmatprep.mubr.f32.mxu0 0.0
  %691 = vmatmul.mubr.f32.gmra.mrb[0].mxu0 %v624
  %v692 = vpop.f32.mrb[0].mxu0
  %v693 = vadd.f32 0.0, %v692
  %v694 = vpop.f32.mrb[0].mxu0
  %v695 = vadd.f32 0.0, %v694
  %696 = vdwg.mxu0
  %v697 = vadd.f32 %v619, %v693
  %v698 = vadd.f32 %v620, %v695
  %v699 = vxor.u32 %v697, 2147483648
  %v700 = vmul.f32 %v699, 1.442695
  %v701 = vpow.pop %v700
  %v702 = vadd.f32 %v701, 1.0
  %v703 = vrcp.pop %v702
  %v704 = vmul.f32 1.0, %v703
  %v705 = vtanh.pop %v698
  %v706 = vxor.u32 %v698, 2147483648
  %v707 = vmul.f32 %v706, 1.442695
  %v708 = vpow.pop %v707
  %v709 = vadd.f32 %v708, 1.0
  %v710 = vrcp.pop %v709
  %v711 = vmul.f32 1.0, %v710
  %v713 = vrot.slane %v608, 6
  %v715 = vmul.f32 %v704, %v713
  %v716 = vmul.f32 %v704, %v705
  %718 = vrot.lane.b32.xlu0 %v716, 64
  %v719 = vpop.permute.xlu0 %718
  %v721 = vadd.f32 %v715, %v719
  %v722 = vtanh.pop %v721
  %v723 = vmul.f32 %v711, %v722
  %725 = vrot.lane.b32.xlu0 %v723, 64
  %v726 = vpop.permute.xlu0 %725
  %728 = vst.msk [vmem:[#allocation3 + $0x8] sm:$0x3] %vm261, %v726
  %729 = vst.msk [vmem:[#allocation3 + $0x6] sm:$0x3] %vm263, %v726
  %v730 = vld [vmem:[#allocation2 + $0x10] sm:$0xc]
  %v731 = vld [vmem:[#allocation2 + $0x18] sm:$0xc]
  %v732 = vsel %vm53, %v726, 0
  %734 = vmatprep.subr.mxu0 %v142
  %735 = vmatpush1.msra.mxu0 %v141
  %736 = vmatprep.subr.mxu0 %v144
  %737 = vmatpush1.msra.mxu0 %v143
  %738 = vmatprep.subr.mxu0 %v146
  %739 = vmatpush1.msra.mxu0 %v145
  %740 = vmatprep.subr.mxu0 %v148
  %741 = vmatpush1.msra.mxu0 %v147
  %742 = vmatprep.subr.mxu0 %v150
  %743 = vmatpush1.msra.mxu0 %v149
  %744 = vmatprep.subr.mxu0 %v152
  %745 = vmatpush1.msra.mxu0 %v151
  %746 = vmatprep.subr.mxu0 %v154
  %747 = vmatpush1.msra.mxu0 %v153
  %748 = vmatprep.subr.mxu0 %v156
  %749 = vmatpush1.msra.mxu0 %v155
  %750 = vmatprep.subr.mxu0 0.0
  %751 = vmatpush1.msra.mxu0 0.0
  %752 = vmatprep.subr.mxu0 0.0
  %753 = vmatpush1.msra.mxu0 0.0
  %754 = vmatprep.subr.mxu0 0.0
  %755 = vmatpush1.msra.mxu0 0.0
  %756 = vmatprep.subr.mxu0 0.0
  %757 = vmatpush1.msra.mxu0 0.0
  %758 = vmatprep.subr.mxu0 0.0
  %759 = vmatpush1.msra.mxu0 0.0
  %760 = vmatprep.subr.mxu0 0.0
  %761 = vmatpush1.msra.mxu0 0.0
  %762 = vmatprep.subr.mxu0 0.0
  %763 = vmatpush1.msra.mxu0 0.0
  %764 = vmatprep.subr.mxu0 0.0
  %765 = vmatpush1.msra.mxu0 0.0
  %766 = vmatprep.subr.mxu0 0.0
  %767 = vmatpush1.msra.mxu0 0.0
  %768 = vmatprep.subr.mxu0 0.0
  %769 = vmatpush1.msra.mxu0 0.0
  %770 = vmatprep.subr.mxu0 0.0
  %771 = vmatpush1.msra.mxu0 0.0
  %772 = vmatprep.subr.mxu0 0.0
  %773 = vmatpush1.msra.mxu0 0.0
  %774 = vmatprep.subr.mxu0 0.0
  %775 = vmatpush1.msra.mxu0 0.0
  %776 = vmatprep.subr.mxu0 0.0
  %777 = vmatpush1.msra.mxu0 0.0
  %778 = vmatprep.subr.mxu0 0.0
  %779 = vmatpush1.msra.mxu0 0.0
  %780 = vmatprep.subr.mxu0 0.0
  %781 = vmatpush1.msra.mxu0 0.0
  %782 = vmatprep.subr.mxu0 0.0
  %783 = vmatpush1.msra.mxu0 0.0
  %784 = vmatprep.subr.mxu0 0.0
  %785 = vmatpush1.msra.mxu0 0.0
  %786 = vmatprep.subr.mxu0 0.0
  %787 = vmatpush1.msra.mxu0 0.0
  %788 = vmatprep.subr.mxu0 0.0
  %789 = vmatpush1.msra.mxu0 0.0
  %790 = vmatprep.subr.mxu0 0.0
  %791 = vmatpush1.msra.mxu0 0.0
  %792 = vmatprep.subr.mxu0 0.0
  %793 = vmatpush1.msra.mxu0 0.0
  %794 = vmatprep.subr.mxu0 0.0
  %795 = vmatpush1.msra.mxu0 0.0
  %796 = vmatprep.subr.mxu0 0.0
  %797 = vmatpush1.msra.mxu0 0.0
  %798 = vmatprep.mubr.f32.mxu0 0.0
  %799 = vmatmul.mubr.f32.gmra.mrb[0].mxu0 %v732
  %v800 = vpop.f32.mrb[0].mxu0
  %v801 = vadd.f32 0.0, %v800
  %v802 = vpop.f32.mrb[0].mxu0
  %v803 = vadd.f32 0.0, %v802
  %804 = vdwg.mxu0
  %v807 = vrot.slane %v801, 6
  %v808 = vrot.slane %v803, 6
  %v811 = vadd.f32 %v730, %v807
  %v812 = vadd.f32 %v731, %v808
  %v813 = vxor.u32 %v811, 2147483648
  %v814 = vmul.f32 %v813, 1.442695
  %v815 = vpow.pop %v814
  %v816 = vadd.f32 %v815, 1.0
  %v817 = vrcp.pop %v816
  %v818 = vmul.f32 1.0, %v817
  %v819 = vtanh.pop %v812
  %v820 = vxor.u32 %v812, 2147483648
  %v821 = vmul.f32 %v820, 1.442695
  %v822 = vpow.pop %v821
  %v823 = vadd.f32 %v822, 1.0
  %v824 = vrcp.pop %v823
  %v825 = vmul.f32 1.0, %v824
  %v827 = vrot.slane %v721, 6
  %v829 = vmul.f32 %v818, %v827
  %v830 = vmul.f32 %v818, %v819
  %832 = vrot.lane.b32.xlu0 %v830, 64
  %v833 = vpop.permute.xlu0 %832
  %v835 = vadd.f32 %v829, %v833
  %v836 = vtanh.pop %v835
  %v837 = vmul.f32 %v825, %v836
  %839 = vrot.lane.b32.xlu0 %v837, 64
  %v840 = vpop.permute.xlu0 %839
  %842 = vst.msk [vmem:[#allocation3 + $0x8] sm:$0xc] %vm377, %v840
  %843 = vst.msk [vmem:[#allocation3 + $0x2] sm:$0xc] %vm379, %v840
  %v844 = vld [vmem:[#allocation2 + $0x10] sm:$0x30]
  %v845 = vld [vmem:[#allocation2 + $0x18] sm:$0x30]
  %v846 = vrot.slane %v837, 2
  %847 = vrot.lane.b32.xlu0 %v846, 64
  %v848 = vpop.permute.xlu0 %847
  %v849 = vsel %vm53, %v848, 0
  %851 = vmatprep.subr.mxu0 %v142
  %852 = vmatpush1.msra.mxu0 %v141
  %853 = vmatprep.subr.mxu0 %v144
  %854 = vmatpush1.msra.mxu0 %v143
  %855 = vmatprep.subr.mxu0 %v146
  %856 = vmatpush1.msra.mxu0 %v145
  %857 = vmatprep.subr.mxu0 %v148
  %858 = vmatpush1.msra.mxu0 %v147
  %859 = vmatprep.subr.mxu0 %v150
  %860 = vmatpush1.msra.mxu0 %v149
  %861 = vmatprep.subr.mxu0 %v152
  %862 = vmatpush1.msra.mxu0 %v151
  %863 = vmatprep.subr.mxu0 %v154
  %864 = vmatpush1.msra.mxu0 %v153
  %865 = vmatprep.subr.mxu0 %v156
  %866 = vmatpush1.msra.mxu0 %v155
  %867 = vmatprep.subr.mxu0 0.0
  %868 = vmatpush1.msra.mxu0 0.0
  %869 = vmatprep.subr.mxu0 0.0
  %870 = vmatpush1.msra.mxu0 0.0
  %871 = vmatprep.subr.mxu0 0.0
  %872 = vmatpush1.msra.mxu0 0.0
  %873 = vmatprep.subr.mxu0 0.0
  %874 = vmatpush1.msra.mxu0 0.0
  %875 = vmatprep.subr.mxu0 0.0
  %876 = vmatpush1.msra.mxu0 0.0
  %877 = vmatprep.subr.mxu0 0.0
  %878 = vmatpush1.msra.mxu0 0.0
  %879 = vmatprep.subr.mxu0 0.0
  %880 = vmatpush1.msra.mxu0 0.0
  %881 = vmatprep.subr.mxu0 0.0
  %882 = vmatpush1.msra.mxu0 0.0
  %883 = vmatprep.subr.mxu0 0.0
  %884 = vmatpush1.msra.mxu0 0.0
  %885 = vmatprep.subr.mxu0 0.0
  %886 = vmatpush1.msra.mxu0 0.0
  %887 = vmatprep.subr.mxu0 0.0
  %888 = vmatpush1.msra.mxu0 0.0
  %889 = vmatprep.subr.mxu0 0.0
  %890 = vmatpush1.msra.mxu0 0.0
  %891 = vmatprep.subr.mxu0 0.0
  %892 = vmatpush1.msra.mxu0 0.0
  %893 = vmatprep.subr.mxu0 0.0
  %894 = vmatpush1.msra.mxu0 0.0
  %895 = vmatprep.subr.mxu0 0.0
  %896 = vmatpush1.msra.mxu0 0.0
  %897 = vmatprep.subr.mxu0 0.0
  %898 = vmatpush1.msra.mxu0 0.0
  %899 = vmatprep.subr.mxu0 0.0
  %900 = vmatpush1.msra.mxu0 0.0
  %901 = vmatprep.subr.mxu0 0.0
  %902 = vmatpush1.msra.mxu0 0.0
  %903 = vmatprep.subr.mxu0 0.0
  %904 = vmatpush1.msra.mxu0 0.0
  %905 = vmatprep.subr.mxu0 0.0
  %906 = vmatpush1.msra.mxu0 0.0
  %907 = vmatprep.subr.mxu0 0.0
  %908 = vmatpush1.msra.mxu0 0.0
  %909 = vmatprep.subr.mxu0 0.0
  %910 = vmatpush1.msra.mxu0 0.0
  %911 = vmatprep.subr.mxu0 0.0
  %912 = vmatpush1.msra.mxu0 0.0
  %913 = vmatprep.subr.mxu0 0.0
  %914 = vmatpush1.msra.mxu0 0.0
  %915 = vmatprep.mubr.f32.mxu0 0.0
  %916 = vmatmul.mubr.f32.gmra.mrb[0].mxu0 %v849
  %v917 = vpop.f32.mrb[0].mxu0
  %v918 = vadd.f32 0.0, %v917
  %v919 = vpop.f32.mrb[0].mxu0
  %v920 = vadd.f32 0.0, %v919
  %921 = vdwg.mxu0
  %v924 = vrot.slane %v918, 4
  %v925 = vrot.slane %v920, 4
  %v928 = vadd.f32 %v844, %v924
  %v929 = vadd.f32 %v845, %v925
  %v930 = vxor.u32 %v928, 2147483648
  %v931 = vmul.f32 %v930, 1.442695
  %v932 = vpow.pop %v931
  %v933 = vadd.f32 %v932, 1.0
  %v934 = vrcp.pop %v933
  %v935 = vmul.f32 1.0, %v934
  %v936 = vtanh.pop %v929
  %v937 = vxor.u32 %v929, 2147483648
  %v938 = vmul.f32 %v937, 1.442695
  %v939 = vpow.pop %v938
  %v940 = vadd.f32 %v939, 1.0
  %v941 = vrcp.pop %v940
  %v942 = vmul.f32 1.0, %v941
  %v944 = vrot.slane %v835, 6
  %v946 = vmul.f32 %v935, %v944
  %v947 = vmul.f32 %v935, %v936
  %949 = vrot.lane.b32.xlu0 %v947, 64
  %v950 = vpop.permute.xlu0 %949
  %v952 = vadd.f32 %v946, %v950
  %v953 = vtanh.pop %v952
  %v954 = vmul.f32 %v942, %v953
  %956 = vrot.lane.b32.xlu0 %v954, 64
  %v957 = vpop.permute.xlu0 %956
  %959 = vst.msk [vmem:[#allocation3 + $0x8] sm:$0x30] %vm496, %v957
  %960 = vst.msk [vmem:[#allocation3 - $0x2] sm:$0x30] %vm498, %v957
  %v961 = vld [vmem:[#allocation2 + $0x10] sm:$0xc0]
  %v962 = vld [vmem:[#allocation2 + $0x18] sm:$0xc0]
  %v963 = vrot.slane %v954, 4
  %964 = vrot.lane.b32.xlu0 %v963, 64
  %v965 = vpop.permute.xlu0 %964
  %v966 = vsel %vm53, %v965, 0
  %968 = vmatprep.subr.mxu0 %v142
  %969 = vmatpush1.msra.mxu0 %v141
  %970 = vmatprep.subr.mxu0 %v144
  %971 = vmatpush1.msra.mxu0 %v143
  %972 = vmatprep.subr.mxu0 %v146
  %973 = vmatpush1.msra.mxu0 %v145
  %974 = vmatprep.subr.mxu0 %v148
  %975 = vmatpush1.msra.mxu0 %v147
  %976 = vmatprep.subr.mxu0 %v150
  %977 = vmatpush1.msra.mxu0 %v149
  %978 = vmatprep.subr.mxu0 %v152
  %979 = vmatpush1.msra.mxu0 %v151
  %980 = vmatprep.subr.mxu0 %v154
  %981 = vmatpush1.msra.mxu0 %v153
  %982 = vmatprep.subr.mxu0 %v156
  %983 = vmatpush1.msra.mxu0 %v155
  %984 = vmatprep.subr.mxu0 0.0
  %985 = vmatpush1.msra.mxu0 0.0
  %986 = vmatprep.subr.mxu0 0.0
  %987 = vmatpush1.msra.mxu0 0.0
  %988 = vmatprep.subr.mxu0 0.0
  %989 = vmatpush1.msra.mxu0 0.0
  %990 = vmatprep.subr.mxu0 0.0
  %991 = vmatpush1.msra.mxu0 0.0
  %992 = vmatprep.subr.mxu0 0.0
  %993 = vmatpush1.msra.mxu0 0.0
  %994 = vmatprep.subr.mxu0 0.0
  %995 = vmatpush1.msra.mxu0 0.0
  %996 = vmatprep.subr.mxu0 0.0
  %997 = vmatpush1.msra.mxu0 0.0
  %998 = vmatprep.subr.mxu0 0.0
  %999 = vmatpush1.msra.mxu0 0.0
  %1000 = vmatprep.subr.mxu0 0.0
  %1001 = vmatpush1.msra.mxu0 0.0
  %1002 = vmatprep.subr.mxu0 0.0
  %1003 = vmatpush1.msra.mxu0 0.0
  %1004 = vmatprep.subr.mxu0 0.0
  %1005 = vmatpush1.msra.mxu0 0.0
  %1006 = vmatprep.subr.mxu0 0.0
  %1007 = vmatpush1.msra.mxu0 0.0
  %1008 = vmatprep.subr.mxu0 0.0
  %1009 = vmatpush1.msra.mxu0 0.0
  %1010 = vmatprep.subr.mxu0 0.0
  %1011 = vmatpush1.msra.mxu0 0.0
  %1012 = vmatprep.subr.mxu0 0.0
  %1013 = vmatpush1.msra.mxu0 0.0
  %1014 = vmatprep.subr.mxu0 0.0
  %1015 = vmatpush1.msra.mxu0 0.0
  %1016 = vmatprep.subr.mxu0 0.0
  %1017 = vmatpush1.msra.mxu0 0.0
  %1018 = vmatprep.subr.mxu0 0.0
  %1019 = vmatpush1.msra.mxu0 0.0
  %1020 = vmatprep.subr.mxu0 0.0
  %1021 = vmatpush1.msra.mxu0 0.0
  %1022 = vmatprep.subr.mxu0 0.0
  %1023 = vmatpush1.msra.mxu0 0.0
  %1024 = vmatprep.subr.mxu0 0.0
  %1025 = vmatpush1.msra.mxu0 0.0
  %1026 = vmatprep.subr.mxu0 0.0
  %1027 = vmatpush1.msra.mxu0 0.0
  %1028 = vmatprep.subr.mxu0 0.0
  %1029 = vmatpush1.msra.mxu0 0.0
  %1030 = vmatprep.subr.mxu0 0.0
  %1031 = vmatpush1.msra.mxu0 0.0
  %1032 = vmatprep.mubr.f32.mxu0 0.0
  %1033 = vmatmul.mubr.f32.gmra.mrb[0].mxu0 %v966
  %v1034 = vpop.f32.mrb[0].mxu0
  %v1035 = vadd.f32 0.0, %v1034
  %v1036 = vpop.f32.mrb[0].mxu0
  %v1037 = vadd.f32 0.0, %v1036
  %1038 = vdwg.mxu0
  %v1041 = vrot.slane %v1035, 2
  %v1042 = vrot.slane %v1037, 2
  %v1045 = vadd.f32 %v961, %v1041
  %v1046 = vadd.f32 %v962, %v1042
  %v1047 = vxor.u32 %v1045, 2147483648
  %v1048 = vmul.f32 %v1047, 1.442695
  %v1049 = vpow.pop %v1048
  %v1050 = vadd.f32 %v1049, 1.0
  %v1051 = vrcp.pop %v1050
  %v1052 = vmul.f32 1.0, %v1051
  %v1053 = vtanh.pop %v1046
  %v1054 = vxor.u32 %v1046, 2147483648
  %v1055 = vmul.f32 %v1054, 1.442695
  %v1056 = vpow.pop %v1055
  %v1057 = vadd.f32 %v1056, 1.0
  %v1058 = vrcp.pop %v1057
  %v1059 = vmul.f32 1.0, %v1058
  %v1061 = vrot.slane %v952, 6
  %v1063 = vmul.f32 %v1052, %v1061
  %v1064 = vmul.f32 %v1052, %v1053
  %1066 = vrot.lane.b32.xlu0 %v1064, 64
  %v1067 = vpop.permute.xlu0 %1066
  %v1069 = vadd.f32 %v1063, %v1067
  %v1070 = vtanh.pop %v1069
  %v1071 = vmul.f32 %v1059, %v1070
  %1073 = vrot.lane.b32.xlu0 %v1071, 64
  %v1074 = vpop.permute.xlu0 %1073
  %1076 = vst.msk [vmem:[#allocation3 + $0x8] sm:$0xc0] %vm615, %v1074
  %1077 = vst.msk [vmem:[#allocation3 - $0x6] sm:$0xc0] %vm617, %v1074
  %v1078 = vld [vmem:[#allocation3] sm:$0xff]
  %v1079 = vld [vmem:[#allocation3 + $0x8] sm:$0xff]
  %v1080 = vld [vmem:[%s4] sm:$0xff]
  %v1081 = vld [vmem:[%s4 + $0x8] sm:$0xff]
  %v1082 = vld [vmem:[%s4 + $0x10] sm:$0xff]
  %v1083 = vld [vmem:[%s4 + $0x18] sm:$0xff]
  %v1084 = vld [vmem:[%s4 + $0x20] sm:$0xff]
  %v1085 = vld [vmem:[%s4 + $0x28] sm:$0xff]
  %v1086 = vld [vmem:[%s4 + $0x30] sm:$0xff]
  %v1087 = vld [vmem:[%s4 + $0x38] sm:$0xff]
  %v1088 = vld [vmem:[%s5] sm:$0x1]
  %v1090 = vlaneseq
  %v1091 = vshrl.u32 %v1090, 7
  %v1092 = vsub.s32 0, %v1091
  %v1093 = vrot.slane %v1088, %v1092
  %v1096 = vsel %vm53, %v1078, 0
  %v1099 = vsel %vm53, %v1079, 0
  %1101 = vmatprep.subr.mxu0 0.0
  %1102 = vmatpush1.msra.mxu0 %v1080
  %1103 = vmatprep.subr.mxu0 0.0
  %1104 = vmatpush1.msra.mxu0 %v1081
  %1105 = vmatprep.subr.mxu0 0.0
  %1106 = vmatpush1.msra.mxu0 %v1082
  %1107 = vmatprep.subr.mxu0 0.0
  %1108 = vmatpush1.msra.mxu0 %v1083
  %1109 = vmatprep.subr.mxu0 0.0
  %1110 = vmatpush1.msra.mxu0 %v1084
  %1111 = vmatprep.subr.mxu0 0.0
  %1112 = vmatpush1.msra.mxu0 %v1085
  %1113 = vmatprep.subr.mxu0 0.0
  %1114 = vmatpush1.msra.mxu0 %v1086
  %1115 = vmatprep.subr.mxu0 0.0
  %1116 = vmatpush1.msra.mxu0 %v1087
  %1117 = vmatprep.subr.mxu0 0.0
  %1118 = vmatpush1.msra.mxu0 0.0
  %1119 = vmatprep.subr.mxu0 0.0
  %1120 = vmatpush1.msra.mxu0 0.0
  %1121 = vmatprep.subr.mxu0 0.0
  %1122 = vmatpush1.msra.mxu0 0.0
  %1123 = vmatprep.subr.mxu0 0.0
  %1124 = vmatpush1.msra.mxu0 0.0
  %1125 = vmatprep.subr.mxu0 0.0
  %1126 = vmatpush1.msra.mxu0 0.0
  %1127 = vmatprep.subr.mxu0 0.0
  %1128 = vmatpush1.msra.mxu0 0.0
  %1129 = vmatprep.subr.mxu0 0.0
  %1130 = vmatpush1.msra.mxu0 0.0
  %1131 = vmatprep.subr.mxu0 0.0
  %1132 = vmatpush1.msra.mxu0 0.0
  %1133 = vmatprep.subr.mxu0 0.0
  %1134 = vmatpush1.msra.mxu0 0.0
  %1135 = vmatprep.subr.mxu0 0.0
  %1136 = vmatpush1.msra.mxu0 0.0
  %1137 = vmatprep.subr.mxu0 0.0
  %1138 = vmatpush1.msra.mxu0 0.0
  %1139 = vmatprep.subr.mxu0 0.0
  %1140 = vmatpush1.msra.mxu0 0.0
  %1141 = vmatprep.subr.mxu0 0.0
  %1142 = vmatpush1.msra.mxu0 0.0
  %1143 = vmatprep.subr.mxu0 0.0
  %1144 = vmatpush1.msra.mxu0 0.0
  %1145 = vmatprep.subr.mxu0 0.0
  %1146 = vmatpush1.msra.mxu0 0.0
  %1147 = vmatprep.subr.mxu0 0.0
  %1148 = vmatpush1.msra.mxu0 0.0
  %1149 = vmatprep.subr.mxu0 0.0
  %1150 = vmatpush1.msra.mxu0 0.0
  %1151 = vmatprep.subr.mxu0 0.0
  %1152 = vmatpush1.msra.mxu0 0.0
  %1153 = vmatprep.subr.mxu0 0.0
  %1154 = vmatpush1.msra.mxu0 0.0
  %1155 = vmatprep.subr.mxu0 0.0
  %1156 = vmatpush1.msra.mxu0 0.0
  %1157 = vmatprep.subr.mxu0 0.0
  %1158 = vmatpush1.msra.mxu0 0.0
  %1159 = vmatprep.subr.mxu0 0.0
  %1160 = vmatpush1.msra.mxu0 0.0
  %1161 = vmatprep.subr.mxu0 0.0
  %1162 = vmatpush1.msra.mxu0 0.0
  %1163 = vmatprep.subr.mxu0 0.0
  %1164 = vmatpush1.msra.mxu0 0.0
  %1165 = vmatprep.mubr.f32.mxu0 0.0
  %1166 = vmatmul.mubr.f32.gmra.mrb[0].mxu0 %v1096
  %v1167 = vpop.f32.mrb[0].mxu0
  %v1168 = vadd.f32 %v1093, %v1167
  %v1169 = vpop.f32.mrb[0].mxu0
  %1170 = vmatprep.mubr.f32.mxu0 0.0
  %1171 = vmatmul.mubr.f32.gmra.mrb[0].mxu0 %v1099
  %v1172 = vpop.f32.mrb[0].mxu0
  %v1173 = vadd.f32 %v1093, %v1172
  %v1174 = vpop.f32.mrb[0].mxu0
  %1175 = vdwg.mxu0
  %vm1176 = vcmask 64512
  %1177 = vst.msk [vmem:[%s6] sm:$0xff] %vm1176, %v1168
  %1178 = vst.msk [vmem:[%s6 + $0x8] sm:$0xff] %vm1176, %v1173
  // Predicated region
  $region26: #{bilstm_crf_forward.1} parent=0 // pred_check
    _
  $region27: #{bilstm_crf_forward.1} parent=0 // pred_check_branch
    %1180 = sbr.rel (0) target = $region29
  $region28: #{bilstm_crf_forward.1} parent=0 // pred_region
    _
  $region29: #{bilstm_crf_forward.1} parent=0 // pred_fallthru
    _
  // Predicated region
  $region30: #{bilstm_crf_forward.1} parent=0 // pred_check
    _
  $region31: #{bilstm_crf_forward.1} parent=0 // pred_check_branch
    %1182 = sbr.rel (0) target = $region33
  $region32: #{bilstm_crf_forward.1} parent=0 // pred_region
    _
  $region33: #{bilstm_crf_forward.1} parent=0 // pred_fallthru
    _

</llo_original>
